<compile_context>
chip_gen: v6e
topology: v6e:2x2x1
jax: 0.10.0
libtpu: 0.0.40
codegen_flags: <defaults>
</compile_context>

<pallas_src>
import math
import numpy as np
import jax
import jax.numpy as jnp
from jax import lax
from jax.experimental import pallas as pl
from jax.experimental.pallas import tpu as pltpu


# ----------------------------- Pallas kernel -----------------------------

def _flash_attn_kernel(q_ref, k_ref, v_ref, b_ref, o_ref, m_sc, l_sc, acc_sc):
    # grid = (batch*head, q-tile, kv-tile); kv-tile is the (innermost) reduction axis.
    kv = pl.program_id(2)

    @pl.when(kv == 0)
    def _init():
        m_sc[...] = jnp.full_like(m_sc, -jnp.inf)
        l_sc[...] = jnp.zeros_like(l_sc)
        acc_sc[...] = jnp.zeros_like(acc_sc)

    dk = q_ref.shape[-1]
    scale = 1.0 / math.sqrt(dk)
    # Fold the softmax scale into q: touches (tq, dk) elements instead of (tq, tk).
    q = q_ref[...].astype(jnp.float32) * scale

    # QK^T with contraction on dk, no physical transpose of K (MXU-friendly).
    s = lax.dot_general(q, k_ref[...],
                        (((1,), (1,)), ((), ())),
                        preferred_element_type=jnp.float32)
    # Additive mask bias (0 or -1e9), precomputed in the wrapper.
    s = s + b_ref[...]

    # Online softmax update.
    m_prev = m_sc[...]
    m_new = jnp.maximum(m_prev, jnp.max(s, axis=-1, keepdims=True))
    alpha = jnp.exp(m_prev - m_new)
    p = jnp.exp(s - m_new)
    l_sc[...] = alpha * l_sc[...] + jnp.sum(p, axis=-1, keepdims=True)
    acc_sc[...] = alpha * acc_sc[...] + lax.dot_general(
        p.astype(v_ref.dtype), v_ref[...],
        (((1,), (0,)), ((), ())),
        preferred_element_type=jnp.float32)
    m_sc[...] = m_new

    @pl.when(kv == pl.num_programs(2) - 1)
    def _finalize():
        l = l_sc[...]
        inv = pl.reciprocal(l, approx=True)       # EUP slot (frees VALU)
        inv = inv * (2.0 - l * inv)               # 1 Newton step on a (tq,1) vector
        o_ref[...] = (acc_sc[...] * inv).astype(o_ref.dtype)


# ----------------------------- wrapper -----------------------------

def scaled_dot_attention(q, k, v, mask=None, *, tq=128, tk=128):
    """q: (..., Sq, dk), k: (..., Sk, dk), v: (..., Sk, dv), mask: (Sq, Sk) or None."""
    *lead, sq, dk = q.shape
    sk = k.shape[-2]
    dv = v.shape[-1]
    bh = 1
    for d in lead:
        bh *= d

    q3 = q.reshape(bh, sq, dk)
    k3 = k.reshape(bh, sk, dk)
    v3 = v.reshape(bh, sk, dv)

    tq = min(tq, sq)
    tk = min(tk, sk)
    assert sq % tq == 0 and sk % tk == 0, "demo wrapper requires divisible tiles"

    # Precompute the additive mask bias once (outside the kernel's inner loop).
    if mask is None:
        bias = jnp.zeros((sq, sk), jnp.float32)
    else:
        bias = jnp.where(mask == 0, jnp.float32(-1e9), jnp.float32(0.0))
        bias = jnp.broadcast_to(bias, (sq, sk)).astype(jnp.float32)

    grid = (bh, sq // tq, sk // tk)

    out = pl.pallas_call(
        _flash_attn_kernel,
        out_shape=jax.ShapeDtypeStruct((bh, sq, dv), q.dtype),
        grid_spec=pltpu.PrefetchScalarGridSpec(
            num_scalar_prefetch=0,
            grid=grid,
            in_specs=[
                pl.BlockSpec((pl.Squeezed(), tq, dk), lambda b, qi, ki: (b, qi, 0)),
                pl.BlockSpec((pl.Squeezed(), tk, dk), lambda b, qi, ki: (b, ki, 0)),
                pl.BlockSpec((pl.Squeezed(), tk, dv), lambda b, qi, ki: (b, ki, 0)),
                pl.BlockSpec((tq, tk), lambda b, qi, ki: (qi, ki)),
            ],
            out_specs=pl.BlockSpec((pl.Squeezed(), tq, dv),
                                   lambda b, qi, ki: (b, qi, 0)),
            scratch_shapes=[
                pltpu.VMEM((tq, 1), jnp.float32),   # running max
                pltpu.VMEM((tq, 1), jnp.float32),   # running sum
                pltpu.VMEM((tq, dv), jnp.float32),  # output accumulator
            ],
        ),
        compiler_params=pltpu.CompilerParams(
            dimension_semantics=("parallel", "parallel", "arbitrary")),
    )(q3, k3, v3, bias)

    return out.reshape(*lead, sq, dv)


# ----------------------------- main -----------------------------

if __name__ == "__main__":
    B, H, SQ, SK, DK = 2, 4, 256, 256, 128

    key = jax.random.PRNGKey(0)
    kq, kk, kv = jax.random.split(key, 3)
    q = jax.random.normal(kq, (B, H, SQ, DK), jnp.float32)
    k = jax.random.normal(kk, (B, H, SK, DK), jnp.float32)
    v = jax.random.normal(kv, (B, H, SK, DK), jnp.float32)
    mask = jnp.tril(jnp.ones((SQ, SK), jnp.float32))   # causal mask, broadcast over B,H

    out = scaled_dot_attention(q, k, v, mask)
    out = jax.block_until_ready(out)

    # pure-JAX reference matching the torch module
    s = jnp.einsum("bhqd,bhkd->bhqk", q, k) / math.sqrt(DK)
    s = jnp.where(mask[None, None] == 0, -1e9, s)
    p = jax.nn.softmax(s, axis=-1)
    ref = jnp.einsum("bhqk,bhkd->bhqd", p, v)

    np.testing.assert_allclose(np.asarray(out), np.asarray(ref), rtol=2e-3, atol=2e-3)

    print("KERNEL_OK")
</pallas_src>

<mosaic_0001>
module attributes {stable_mosaic.version = 11 : i64} {
  func.func @_flash_attn_kernel(%arg0: i32, %arg1: i32, %arg2: i32, %arg3: memref<1x128x128xf32, #tpu.memory_space<vmem>>, %arg4: memref<1x128x128xf32, #tpu.memory_space<vmem>>, %arg5: memref<1x128x128xf32, #tpu.memory_space<vmem>>, %arg6: memref<128x128xf32, #tpu.memory_space<vmem>>, %arg7: memref<1x128x128xf32, #tpu.memory_space<vmem>>, %arg8: memref<128x1xf32, #tpu.memory_space<vmem>>, %arg9: memref<128x1xf32, #tpu.memory_space<vmem>>, %arg10: memref<128x128xf32, #tpu.memory_space<vmem>>) attributes {dimension_semantics = [#tpu.dimension_semantics<parallel>, #tpu.dimension_semantics<parallel>, #tpu.dimension_semantics<arbitrary>], iteration_bounds = array<i64: 8, 2, 2>, scalar_prefetch = 0 : i64, scratch_operands = 3 : i64, tpu.core_type = #tpu.core_type<tc>, window_params = [{transform_indices = @transform_0, window_bounds = array<i64: 1, 128, 128>}, {transform_indices = @transform_1, window_bounds = array<i64: 1, 128, 128>}, {transform_indices = @transform_2, window_bounds = array<i64: 1, 128, 128>}, {transform_indices = @transform_3, window_bounds = array<i64: 128, 128>}, {transform_indices = @transform_4, window_bounds = array<i64: 1, 128, 128>}]} {
    %c0_i32 = arith.constant 0 : i32
    %0 = arith.cmpi eq, %arg2, %c0_i32 : i32
    %1 = arith.extui %0 : i1 to i32
    %c0_i32_0 = arith.constant 0 : i32
    %2 = arith.cmpi ne, %1, %c0_i32_0 : i32
    scf.if %2 {
      %cst_28 = arith.constant 0xFF800000 : f32
      %39 = vector.broadcast %cst_28 : f32 to vector<128x1xf32>
      %c0_29 = arith.constant 0 : index
      %c0_30 = arith.constant 0 : index
      %40 = vector.load %arg8[%c0_29, %c0_30] : memref<128x1xf32, #tpu.memory_space<vmem>>, vector<128x1xf32>
      tpu.vector_store %arg8[%c0_29, %c0_30], %39 {strides = array<i32>} : memref<128x1xf32, #tpu.memory_space<vmem>>, vector<128x1xf32>,
      %cst_31 = arith.constant 0.000000e+00 : f32
      %41 = vector.broadcast %cst_31 : f32 to vector<128x1xf32>
      %c0_32 = arith.constant 0 : index
      %c0_33 = arith.constant 0 : index
      %42 = vector.load %arg9[%c0_32, %c0_33] : memref<128x1xf32, #tpu.memory_space<vmem>>, vector<128x1xf32>
      tpu.vector_store %arg9[%c0_32, %c0_33], %41 {strides = array<i32>} : memref<128x1xf32, #tpu.memory_space<vmem>>, vector<128x1xf32>,
      %cst_34 = arith.constant 0.000000e+00 : f32
      %43 = vector.broadcast %cst_34 : f32 to vector<128x128xf32>
      %c0_35 = arith.constant 0 : index
      %c0_36 = arith.constant 0 : index
      %44 = vector.load %arg10[%c0_35, %c0_36] : memref<128x128xf32, #tpu.memory_space<vmem>>, vector<128x128xf32>
      tpu.vector_store %arg10[%c0_35, %c0_36], %43 {strides = array<i32>} : memref<128x128xf32, #tpu.memory_space<vmem>>, vector<128x128xf32>,
    } else {
    }
    %c0 = arith.constant 0 : index
    %c0_1 = arith.constant 0 : index
    %c0_2 = arith.constant 0 : index
    %3 = vector.load %arg3[%c0, %c0_1, %c0_2] : memref<1x128x128xf32, #tpu.memory_space<vmem>>, vector<1x128x128xf32>
    %4 = vector.shape_cast %3 : vector<1x128x128xf32> to vector<128x128xf32>
    %cst = arith.constant 0.0883883461 : f32
    %5 = vector.broadcast %cst : f32 to vector<128x128xf32>
    %6 = arith.mulf %4, %5 : vector<128x128xf32>
    %c0_3 = arith.constant 0 : index
    %c0_4 = arith.constant 0 : index
    %c0_5 = arith.constant 0 : index
    %7 = vector.load %arg4[%c0_3, %c0_4, %c0_5] : memref<1x128x128xf32, #tpu.memory_space<vmem>>, vector<1x128x128xf32>
    %8 = vector.shape_cast %7 : vector<1x128x128xf32> to vector<128x128xf32>
    %cst_6 = arith.constant dense<0.000000e+00> : vector<128x128xf32>
    %9 = tpu.matmul %6, %8, %cst_6 {dimension_numbers = #tpu.dot_dimension_numbers<[1], [1], [0], [0], [0, 0, 1, 0], [], []>} : vector<128x128xf32>, vector<128x128xf32>, vector<128x128xf32> -> vector<128x128xf32>
    %c0_7 = arith.constant 0 : index
    %c0_8 = arith.constant 0 : index
    %10 = vector.load %arg6[%c0_7, %c0_8] : memref<128x128xf32, #tpu.memory_space<vmem>>, vector<128x128xf32>
    %11 = arith.addf %9, %10 : vector<128x128xf32>
    %c0_9 = arith.constant 0 : index
    %c0_10 = arith.constant 0 : index
    %12 = vector.load %arg8[%c0_9, %c0_10] : memref<128x1xf32, #tpu.memory_space<vmem>>, vector<128x1xf32>
    %cst_11 = arith.constant dense<0xFF800000> : vector<128xf32>
    %13 = vector.multi_reduction <maximumf>, %11, %cst_11 [1] : vector<128x128xf32> to vector<128xf32>
    %14 = vector.shape_cast %13 : vector<128xf32> to vector<128x1xf32>
    %15 = arith.maximumf %12, %14 : vector<128x1xf32>
    %16 = arith.subf %12, %15 : vector<128x1xf32>
    %17 = math.exp %16 : vector<128x1xf32>
    %18 = vector.broadcast %15 : vector<128x1xf32> to vector<128x128xf32>
    %19 = arith.subf %11, %18 : vector<128x128xf32>
    %20 = math.exp %19 : vector<128x128xf32>
    %c0_12 = arith.constant 0 : index
    %c0_13 = arith.constant 0 : index
    %21 = vector.load %arg9[%c0_12, %c0_13] : memref<128x1xf32, #tpu.memory_space<vmem>>, vector<128x1xf32>
    %22 = arith.mulf %17, %21 : vector<128x1xf32>
    %cst_14 = arith.constant dense<0.000000e+00> : vector<128xf32>
    %23 = vector.multi_reduction <add>, %20, %cst_14 [1] : vector<128x128xf32> to vector<128xf32>
    %24 = vector.shape_cast %23 : vector<128xf32> to vector<128x1xf32>
    %25 = arith.addf %22, %24 : vector<128x1xf32>
    %c0_15 = arith.constant 0 : index
    %c0_16 = arith.constant 0 : index
    %26 = vector.load %arg9[%c0_15, %c0_16] : memref<128x1xf32, #tpu.memory_space<vmem>>, vector<128x1xf32>
    tpu.vector_store %arg9[%c0_15, %c0_16], %25 {strides = array<i32>} : memref<128x1xf32, #tpu.memory_space<vmem>>, vector<128x1xf32>,
    %c0_17 = arith.constant 0 : index
    %c0_18 = arith.constant 0 : index
    %27 = vector.load %arg10[%c0_17, %c0_18] : memref<128x128xf32, #tpu.memory_space<vmem>>, vector<128x128xf32>
    %28 = vector.broadcast %17 : vector<128x1xf32> to vector<128x128xf32>
    %29 = arith.mulf %28, %27 : vector<128x128xf32>
    %c0_19 = arith.constant 0 : index
    %c0_20 = arith.constant 0 : index
    %c0_21 = arith.constant 0 : index
    %30 = vector.load %arg5[%c0_19, %c0_20, %c0_21] : memref<1x128x128xf32, #tpu.memory_space<vmem>>, vector<1x128x128xf32>
    %31 = vector.shape_cast %30 : vector<1x128x128xf32> to vector<128x128xf32>
    %cst_22 = arith.constant dense<0.000000e+00> : vector<128x128xf32>
    %32 = tpu.matmul %20, %31, %cst_22 {dimension_numbers = #tpu.dot_dimension_numbers<[1], [0], [0], [1], [0, 0, 1, 1], [], []>} : vector<128x128xf32>, vector<128x128xf32>, vector<128x128xf32> -> vector<128x128xf32>
    %33 = arith.addf %29, %32 : vector<128x128xf32>
    %c0_23 = arith.constant 0 : index
    %c0_24 = arith.constant 0 : index
    %34 = vector.load %arg10[%c0_23, %c0_24] : memref<128x128xf32, #tpu.memory_space<vmem>>, vector<128x128xf32>
    tpu.vector_store %arg10[%c0_23, %c0_24], %33 {strides = array<i32>} : memref<128x128xf32, #tpu.memory_space<vmem>>, vector<128x128xf32>,
    %c0_25 = arith.constant 0 : index
    %c0_26 = arith.constant 0 : index
    %35 = vector.load %arg8[%c0_25, %c0_26] : memref<128x1xf32, #tpu.memory_space<vmem>>, vector<128x1xf32>
    tpu.vector_store %arg8[%c0_25, %c0_26], %15 {strides = array<i32>} : memref<128x1xf32, #tpu.memory_space<vmem>>, vector<128x1xf32>,
    %c1_i32 = arith.constant 1 : i32
    %36 = arith.cmpi eq, %arg2, %c1_i32 : i32
    %37 = arith.extui %36 : i1 to i32
    %c0_i32_27 = arith.constant 0 : i32
    %38 = arith.cmpi ne, %37, %c0_i32_27 : i32
    scf.if %38 {
      %c0_28 = arith.constant 0 : index
      %c0_29 = arith.constant 0 : index
      %39 = vector.load %arg9[%c0_28, %c0_29] : memref<128x1xf32, #tpu.memory_space<vmem>>, vector<128x1xf32>
      %40 = tpu.reciprocal %39 {approx = true} : vector<128x1xf32> -> vector<128x1xf32>
      %41 = arith.mulf %39, %40 : vector<128x1xf32>
      %cst_30 = arith.constant 2.000000e+00 : f32
      %42 = vector.broadcast %cst_30 : f32 to vector<128x1xf32>
      %43 = arith.subf %42, %41 : vector<128x1xf32>
      %44 = arith.mulf %40, %43 : vector<128x1xf32>
      %c0_31 = arith.constant 0 : index
      %c0_32 = arith.constant 0 : index
      %45 = vector.load %arg10[%c0_31, %c0_32] : memref<128x128xf32, #tpu.memory_space<vmem>>, vector<128x128xf32>
      %46 = vector.broadcast %44 : vector<128x1xf32> to vector<128x128xf32>
      %47 = arith.mulf %45, %46 : vector<128x128xf32>
      %c0_33 = arith.constant 0 : index
      %c0_34 = arith.constant 0 : index
      %c0_35 = arith.constant 0 : index
      %48 = vector.load %arg7[%c0_33, %c0_34, %c0_35] : memref<1x128x128xf32, #tpu.memory_space<vmem>>, vector<1x128x128xf32>
      %49 = vector.shape_cast %48 : vector<1x128x128xf32> to vector<128x128xf32>
      %50 = vector.shape_cast %47 : vector<128x128xf32> to vector<1x128x128xf32>
      tpu.vector_store %arg7[%c0_33, %c0_34, %c0_35], %50 {strides = array<i32>} : memref<1x128x128xf32, #tpu.memory_space<vmem>>, vector<1x128x128xf32>,
    } else {
    }
    return
  }
  func.func @transform_0(%arg0: i32, %arg1: i32, %arg2: i32) -> (i32, i32, i32) {
    %c0_i32 = arith.constant 0 : i32
    %c0_i32_0 = arith.constant 0 : i32
    return %arg0, %arg1, %c0_i32 : i32, i32, i32
  }
  func.func @transform_1(%arg0: i32, %arg1: i32, %arg2: i32) -> (i32, i32, i32) {
    %c0_i32 = arith.constant 0 : i32
    %c0_i32_0 = arith.constant 0 : i32
    return %arg0, %arg2, %c0_i32 : i32, i32, i32
  }
  func.func @transform_2(%arg0: i32, %arg1: i32, %arg2: i32) -> (i32, i32, i32) {
    %c0_i32 = arith.constant 0 : i32
    %c0_i32_0 = arith.constant 0 : i32
    return %arg0, %arg2, %c0_i32 : i32, i32, i32
  }
  func.func @transform_3(%arg0: i32, %arg1: i32, %arg2: i32) -> (i32, i32) {
    %c0_i32 = arith.constant 0 : i32
    return %arg1, %arg2 : i32, i32
  }
  func.func @transform_4(%arg0: i32, %arg1: i32, %arg2: i32) -> (i32, i32, i32) {
    %c0_i32 = arith.constant 0 : i32
    %c0_i32_0 = arith.constant 0 : i32
    return %arg0, %arg1, %c0_i32 : i32, i32, i32
  }
}

</mosaic_0001>

<llo_original>
// kernel: tpu_custom_call.1
$region0: #{tpu_custom_call.1}
  #allocation0 [shape = 'u32[]', space=smem, size = 0x4, offset = 0x4, fixed_abs, tag = 'smem constant byte address 0x4 - core index']
  #allocation1 [shape = 'u32[144,128]{1,0:T(1,128)}', space=vmem, size = 0x12000, scoped, tag = 'internal scratch']
  #allocation2 [shape = 'f32[128,1]{1,0:T(8,128)}', space=vmem, size = 0x10000, scoped, tag = 'scratch operand']
  #allocation3 [shape = 'f32[128,1]{1,0:T(8,128)}', space=vmem, size = 0x10000, scoped, tag = 'scratch operand']
  #allocation4 [shape = 'f32[128,128]{1,0:T(8,128)}', space=vmem, size = 0x10000, scoped, tag = 'scratch operand']
  %s0 = inlined_call_operand.hbm [shape: f32[8,256,128], index: 0, kind: input, shape index: {}]
  %s1 = inlined_call_operand.hbm [shape: f32[8,256,128], index: 1, kind: input, shape index: {}]
  %s2 = inlined_call_operand.hbm [shape: f32[8,256,128], index: 2, kind: input, shape index: {}]
  %s3 = inlined_call_operand.hbm [shape: f32[256,256], index: 3, kind: input, shape index: {}]
  %s4 = inlined_call_operand.hbm [shape: f32[8,256,128], index: 4, kind: output, shape index: {}]
  %s5 = sld [smem:[#allocation0]]
  $region73: #{tpu_custom_call.1} parent=0
    _
  %s7 = ssub.s32 1, %s5
  %s8 = scalar_select 0, %s7, %s5
  $region1: #{tpu_custom_call.1} parent=0
    #allocation5 [shape = 'u8[131072]{0}', space=vmem, size = 0x20000, scoped, tag = 'input window, operand 0']
    #allocation6 [shape = 's32[2]{0}', space=sflag, size = 0x8, scoped, tag = 'scoped memory for tpu_custom_call.1']
    #allocation7 [shape = 's32[2]{0}', space=sflag, size = 0x8, scoped, tag = 'scoped memory for tpu_custom_call.1']
    #allocation8 [shape = 'u8[131072]{0}', space=vmem, size = 0x20000, scoped, tag = 'input window, operand 1']
    #allocation9 [shape = 's32[2]{0}', space=sflag, size = 0x8, scoped, tag = 'scoped memory for tpu_custom_call.1']
    #allocation10 [shape = 'u8[131072]{0}', space=vmem, size = 0x20000, scoped, tag = 'input window, operand 2']
    #allocation11 [shape = 'u8[131072]{0}', space=vmem, size = 0x20000, scoped, tag = 'input window, operand 3']
    #allocation12 [shape = 's32[2]{0}', space=sflag, size = 0x8, scoped, tag = 'scoped memory for tpu_custom_call.1']
    #allocation13 [shape = 'u8[131072]{0}', space=vmem, size = 0x20000, scoped, tag = 'output window, operand 0']
    %9 = vsyncpa [#allocation6], 0
    %s10 = scalar_lea.sflag [#allocation6], 1
    %11 = vsyncpa %s10, 0
    %12 = vsyncpa [#allocation9], 0
    %s13 = scalar_lea.sflag [#allocation9], 1
    %14 = vsyncpa %s13, 0
    %15 = vsyncpa [#allocation12], 0
    %s16 = scalar_lea.sflag [#allocation12], 1
    %17 = vsyncpa %s16, 0
    %18 = vsyncpa [#allocation7], 0
    %s19 = scalar_lea.sflag [#allocation7], 1
    %20 = vsyncpa %s19, 0
    loop: start=0, step=1, limit=34
    $region2: #{tpu_custom_call.1} parent=1 // loop_pre_header
      _
    $region3: #{tpu_custom_call.1} parent=1 // loop_header
      %s22 = sphi 0, %s26
      %p23 = scmp.ge.s32.totalorder %s22, 34
      %s29 = sphi 0, %s48
      %s30 = sphi 0, %s44
      %s31 = sphi 0, %s40
      %s32 = sphi 0, %s29
      %s33 = sphi 0, %s30
      %s34 = sphi 0, %s31
      %s35 = sphi 0, %s32
      %s36 = sphi 0, %s33
      %s37 = sphi 0, %s34
      %s53 = sphi 0, %s55
      %s56 = sphi 0, %s53
      %s57 = sphi 0, %s56
      %s73 = sphi 0, %s57
      %s81 = sphi 0, %s83
      %s84 = sphi 0, %s81
      %s85 = sphi 0, %s84
      %s101 = sphi 0, %s85
      %s109 = sphi 0, %s111
      %s112 = sphi 0, %s109
      %s113 = sphi 0, %s112
      %s129 = sphi 0, %s113
      %s137 = sphi 0, %s139
      %s140 = sphi 0, %s137
      %s141 = sphi 0, %s140
      %s157 = sphi 0, %s141
      %s165 = sphi 0, %s167
      %s168 = sphi 0, %s165
      %s169 = sphi 0, %s168
      %s185 = sphi 0, %s169
    $region4: #{tpu_custom_call.1} parent=1 // loop_header_branch
      %25 = sbr.rel (%p23) target = $region8
    $region5: #{tpu_custom_call.1} parent=1 // loop_body
      %s27 = ssub.s32 %s22, 1
      %s28 = ssub.s32 %s22, 2
      %s38 = sadd.s32 1, %s31
      %p39 = scmp.ge.s32.totalorder %s38, 2
      %s40 = scalar_select %p39, 0, %s38
      %s41 = sadd.s32 1, %s30
      %s42 = scalar_select %p39, %s41, %s30
      %p43 = scmp.ge.s32.totalorder %s42, 2
      %s44 = scalar_select %p43, 0, %s42
      %s45 = sadd.s32 1, %s29
      %s46 = scalar_select %p43, %s45, %s29
      %p47 = scmp.ge.s32.totalorder %s46, 8
      %s48 = scalar_select %p47, 0, %s46
      %s49 = ssub.s32 %s29, %s48
      %s50 = ssub.s32 %s30, %s44
      %s51 = sor.u32 %s49, %s50
      %p52 = scmp.eq.s32.totalorder %s51, 0
      %s54 = sadd.s32 %s53, 1
      %s55 = scalar_select %p52, %s53, %s54
      %p58 = pneg %p52
      %p59 = scmp.eq.s32.totalorder %s22, 31
      %p60 = por %p58, %p59
      %p61 = scmp.ne.s32.totalorder %s53, %s56
      %p62 = scmp.eq.s32.totalorder %s22, 0
      %p63 = por %p61, %p62
      %p64 = scmp.ne.s32.totalorder %s53, %s56
      %p65 = scmp.eq.s32.totalorder %s27, 31
      %p66 = por %p64, %p65
      %p67 = scmp.ne.s32.totalorder %s56, %s57
      %p68 = scmp.eq.s32.totalorder %s27, 0
      %p69 = por %p67, %p68
      %p70 = scmp.ne.s32.totalorder %s56, %s57
      %p71 = scmp.eq.s32.totalorder %s28, 31
      %p72 = por %p70, %p71
      %p74 = scmp.ne.s32.totalorder %s57, %s73
      %p75 = scmp.eq.s32.totalorder %s28, 0
      %p76 = por %p74, %p75
      %s77 = ssub.s32 %s29, %s48
      %s78 = ssub.s32 %s31, %s40
      %s79 = sor.u32 %s77, %s78
      %p80 = scmp.eq.s32.totalorder %s79, 0
      %s82 = sadd.s32 %s81, 1
      %s83 = scalar_select %p80, %s81, %s82
      %p86 = pneg %p80
      %p87 = scmp.eq.s32.totalorder %s22, 31
      %p88 = por %p86, %p87
      %p89 = scmp.ne.s32.totalorder %s81, %s84
      %p90 = scmp.eq.s32.totalorder %s22, 0
      %p91 = por %p89, %p90
      %p92 = scmp.ne.s32.totalorder %s81, %s84
      %p93 = scmp.eq.s32.totalorder %s27, 31
      %p94 = por %p92, %p93
      %p95 = scmp.ne.s32.totalorder %s84, %s85
      %p96 = scmp.eq.s32.totalorder %s27, 0
      %p97 = por %p95, %p96
      %p98 = scmp.ne.s32.totalorder %s84, %s85
      %p99 = scmp.eq.s32.totalorder %s28, 31
      %p100 = por %p98, %p99
      %p102 = scmp.ne.s32.totalorder %s85, %s101
      %p103 = scmp.eq.s32.totalorder %s28, 0
      %p104 = por %p102, %p103
      %s105 = ssub.s32 %s29, %s48
      %s106 = ssub.s32 %s31, %s40
      %s107 = sor.u32 %s105, %s106
      %p108 = scmp.eq.s32.totalorder %s107, 0
      %s110 = sadd.s32 %s109, 1
      %s111 = scalar_select %p108, %s109, %s110
      %p114 = pneg %p108
      %p115 = scmp.eq.s32.totalorder %s22, 31
      %p116 = por %p114, %p115
      %p117 = scmp.ne.s32.totalorder %s109, %s112
      %p118 = scmp.eq.s32.totalorder %s22, 0
      %p119 = por %p117, %p118
      %p120 = scmp.ne.s32.totalorder %s109, %s112
      %p121 = scmp.eq.s32.totalorder %s27, 31
      %p122 = por %p120, %p121
      %p123 = scmp.ne.s32.totalorder %s112, %s113
      %p124 = scmp.eq.s32.totalorder %s27, 0
      %p125 = por %p123, %p124
      %p126 = scmp.ne.s32.totalorder %s112, %s113
      %p127 = scmp.eq.s32.totalorder %s28, 31
      %p128 = por %p126, %p127
      %p130 = scmp.ne.s32.totalorder %s113, %s129
      %p131 = scmp.eq.s32.totalorder %s28, 0
      %p132 = por %p130, %p131
      %s133 = ssub.s32 %s30, %s44
      %s134 = ssub.s32 %s31, %s40
      %s135 = sor.u32 %s133, %s134
      %p136 = scmp.eq.s32.totalorder %s135, 0
      %s138 = sadd.s32 %s137, 1
      %s139 = scalar_select %p136, %s137, %s138
      %p142 = pneg %p136
      %p143 = scmp.eq.s32.totalorder %s22, 31
      %p144 = por %p142, %p143
      %p145 = scmp.ne.s32.totalorder %s137, %s140
      %p146 = scmp.eq.s32.totalorder %s22, 0
      %p147 = por %p145, %p146
      %p148 = scmp.ne.s32.totalorder %s137, %s140
      %p149 = scmp.eq.s32.totalorder %s27, 31
      %p150 = por %p148, %p149
      %p151 = scmp.ne.s32.totalorder %s140, %s141
      %p152 = scmp.eq.s32.totalorder %s27, 0
      %p153 = por %p151, %p152
      %p154 = scmp.ne.s32.totalorder %s140, %s141
      %p155 = scmp.eq.s32.totalorder %s28, 31
      %p156 = por %p154, %p155
      %p158 = scmp.ne.s32.totalorder %s141, %s157
      %p159 = scmp.eq.s32.totalorder %s28, 0
      %p160 = por %p158, %p159
      %s161 = ssub.s32 %s29, %s48
      %s162 = ssub.s32 %s30, %s44
      %s163 = sor.u32 %s161, %s162
      %p164 = scmp.eq.s32.totalorder %s163, 0
      %s166 = sadd.s32 %s165, 1
      %s167 = scalar_select %p164, %s165, %s166
      %p170 = pneg %p164
      %p171 = scmp.eq.s32.totalorder %s22, 31
      %p172 = por %p170, %p171
      %p173 = scmp.ne.s32.totalorder %s165, %s168
      %p174 = scmp.eq.s32.totalorder %s22, 0
      %p175 = por %p173, %p174
      %p176 = scmp.ne.s32.totalorder %s165, %s168
      %p177 = scmp.eq.s32.totalorder %s27, 31
      %p178 = por %p176, %p177
      %p179 = scmp.ne.s32.totalorder %s168, %s169
      %p180 = scmp.eq.s32.totalorder %s27, 0
      %p181 = por %p179, %p180
      %p182 = scmp.ne.s32.totalorder %s168, %s169
      %p183 = scmp.eq.s32.totalorder %s28, 31
      %p184 = por %p182, %p183
      %p186 = scmp.ne.s32.totalorder %s169, %s185
      %p187 = scmp.eq.s32.totalorder %s28, 0
      %p188 = por %p186, %p187
      %p189 = scmp.le.s32.totalorder 1, %s22
      %p190 = scmp.lt.s32.totalorder %s22, 33
      %p191 = pnand %p189, %p190
      %p192 = pneg %p191
      // Predicated region
      $region9: #{tpu_custom_call.1} parent=5 // pred_check
        _
      $region10: #{tpu_custom_call.1} parent=5 // pred_check_branch
        %194 = sbr.rel (%p191) target = $region12
      $region11: #{tpu_custom_call.1} parent=5 // pred_region
        %s195 = ssub.s32 %s22, 1
      $region12: #{tpu_custom_call.1} parent=5 // pred_fallthru
        _
      %p196 = scmp.lt.s32.totalorder %s22, 32
      // Predicated region
      $region13: #{tpu_custom_call.1} parent=5 // pred_check
        %p197 = pneg %p196
      $region14: #{tpu_custom_call.1} parent=5 // pred_check_branch
        %199 = sbr.rel (%p197) target = $region16
      $region15: #{tpu_custom_call.1} parent=5 // pred_region
        // Predicated region
        $region17: #{tpu_custom_call.1} parent=15 // pred_check
          %p200 = pneg %p63
        $region18: #{tpu_custom_call.1} parent=15 // pred_check_branch
          %202 = sbr.rel (%p200) target = $region20
        $region19: #{tpu_custom_call.1} parent=15 // pred_region
          %s203 = sand.u32 %s53, 1
          %s204 = scalar_lea.sflag [#allocation6], %s203
          %s205 = sand.u32 %s53, 1
          %s206 = smul.addr %s205, 128
          %s207 = scalar_lea.vmem [#allocation5], %s206
          %s208 = smul.u32 16, %s30
          %s210 = ssub.s32 2048, 2048
          %211 = vsyncadd %s204, %s210
          %s212 = smul.addr %s29, 32
          %s213 = sadd.s32 %s208, %s212
          %s214 = smul.addr %s213, 128
          %s215 = scalar_lea.hbm %s0, %s214
          %s216 = sshll.u32 %s207, 4
          %s217 = int_to_ptr.vmem [resolvable:$true] %s216
          %222 = dma.hbm_to_vmem [thread:$0]  %s215, 2048, %s217, %s204, 128, 128, 8
        $region20: #{tpu_custom_call.1} parent=15 // pred_fallthru
          _
        // Predicated region
        $region21: #{tpu_custom_call.1} parent=15 // pred_check
          %p223 = pneg %p91
        $region22: #{tpu_custom_call.1} parent=15 // pred_check_branch
          %225 = sbr.rel (%p223) target = $region24
        $region23: #{tpu_custom_call.1} parent=15 // pred_region
          %s226 = sand.u32 %s22, 1
          %s227 = scalar_lea.sflag [#allocation9], %s226
          %s228 = sand.u32 %s81, 1
          %s229 = smul.addr %s228, 128
          %s230 = scalar_lea.vmem [#allocation8], %s229
          %s231 = smul.u32 16, %s31
          %s233 = ssub.s32 2048, 2048
          %234 = vsyncadd %s227, %s233
          %s235 = smul.addr %s29, 32
          %s236 = sadd.s32 %s231, %s235
          %s237 = smul.addr %s236, 128
          %s238 = scalar_lea.hbm %s1, %s237
          %s239 = sshll.u32 %s230, 4
          %s240 = int_to_ptr.vmem [resolvable:$true] %s239
          %245 = dma.hbm_to_vmem [thread:$0]  %s238, 2048, %s240, %s227, 128, 128, 8
        $region24: #{tpu_custom_call.1} parent=15 // pred_fallthru
          _
        // Predicated region
        $region25: #{tpu_custom_call.1} parent=15 // pred_check
          %p246 = pneg %p119
        $region26: #{tpu_custom_call.1} parent=15 // pred_check_branch
          %248 = sbr.rel (%p246) target = $region28
        $region27: #{tpu_custom_call.1} parent=15 // pred_region
          %s249 = sand.u32 %s22, 1
          %s250 = scalar_lea.sflag [#allocation9], %s249
          %s251 = sand.u32 %s109, 1
          %s252 = smul.addr %s251, 128
          %s253 = scalar_lea.vmem [#allocation10], %s252
          %s254 = smul.u32 16, %s31
          %s256 = ssub.s32 2048, 2048
          %257 = vsyncadd %s250, %s256
          %s258 = smul.addr %s29, 32
          %s259 = sadd.s32 %s254, %s258
          %s260 = smul.addr %s259, 128
          %s261 = scalar_lea.hbm %s2, %s260
          %s262 = sshll.u32 %s253, 4
          %s263 = int_to_ptr.vmem [resolvable:$true] %s262
          %268 = dma.hbm_to_vmem [thread:$0]  %s261, 2048, %s263, %s250, 128, 128, 8
        $region28: #{tpu_custom_call.1} parent=15 // pred_fallthru
          _
        // Predicated region
        $region29: #{tpu_custom_call.1} parent=15 // pred_check
          %p269 = pneg %p147
        $region30: #{tpu_custom_call.1} parent=15 // pred_check_branch
          %271 = sbr.rel (%p269) target = $region32
        $region31: #{tpu_custom_call.1} parent=15 // pred_region
          %s272 = sand.u32 %s137, 1
          %s273 = scalar_lea.sflag [#allocation12], %s272
          %s274 = sand.u32 %s137, 1
          %s275 = smul.addr %s274, 128
          %s276 = scalar_lea.vmem [#allocation11], %s275
          %s277 = smul.u32 16, %s30
          %s279 = ssub.s32 2048, 2048
          %280 = vsyncadd %s273, %s279
          %s281 = smul.addr %s277, 2
          %s282 = sadd.s32 %s31, %s281
          %s283 = smul.addr %s282, 128
          %s284 = scalar_lea.hbm %s3, %s283
          %s285 = sshll.u32 %s276, 4
          %s286 = int_to_ptr.vmem [resolvable:$true] %s285
          %291 = dma.hbm_to_vmem [thread:$0]  %s284, 2048, %s286, %s273, 256, 128, 8
        $region32: #{tpu_custom_call.1} parent=15 // pred_fallthru
          _
      $region16: #{tpu_custom_call.1} parent=5 // pred_fallthru
        _
      %p292 = scmp.le.s32.totalorder 1, %s22
      %p293 = scmp.lt.s32.totalorder %s22, 33
      %p294 = pnand %p292, %p293
      %p295 = pneg %p294
      // Predicated region
      $region33: #{tpu_custom_call.1} parent=5 // pred_check
        _
      $region34: #{tpu_custom_call.1} parent=5 // pred_check_branch
        %297 = sbr.rel (%p294) target = $region36
      $region35: #{tpu_custom_call.1} parent=5 // pred_region
        %s298 = ssub.s32 %s22, 1
        %s299 = sand.u32 %s56, 1
        %s300 = scalar_lea.sflag [#allocation6], %s299
        %s301 = sand.u32 %s56, 1
        %s302 = smul.addr %s301, 128
        %s303 = scalar_lea.vmem [#allocation5], %s302
        // Predicated region
        $region37: #{tpu_custom_call.1} parent=35 // pred_check
          %p304 = pneg %p69
        $region38: #{tpu_custom_call.1} parent=35 // pred_check_branch
          %306 = sbr.rel (%p304) target = $region40
        $region39: #{tpu_custom_call.1} parent=35 // pred_region
          %307 = dma.done %s300, 2048
        $region40: #{tpu_custom_call.1} parent=35 // pred_fallthru
          _
        %s308 = sand.u32 %s27, 1
        %s309 = scalar_lea.sflag [#allocation9], %s308
        %s310 = sand.u32 %s84, 1
        %s311 = smul.addr %s310, 128
        %s312 = scalar_lea.vmem [#allocation8], %s311
        // Predicated region
        $region41: #{tpu_custom_call.1} parent=35 // pred_check
          %p313 = pneg %p97
        $region42: #{tpu_custom_call.1} parent=35 // pred_check_branch
          %315 = sbr.rel (%p313) target = $region44
        $region43: #{tpu_custom_call.1} parent=35 // pred_region
          %316 = dma.done %s309, 2048
        $region44: #{tpu_custom_call.1} parent=35 // pred_fallthru
          _
        %s317 = sand.u32 %s27, 1
        %s318 = scalar_lea.sflag [#allocation9], %s317
        %s319 = sand.u32 %s112, 1
        %s320 = smul.addr %s319, 128
        %s321 = scalar_lea.vmem [#allocation10], %s320
        // Predicated region
        $region45: #{tpu_custom_call.1} parent=35 // pred_check
          %p322 = pneg %p125
        $region46: #{tpu_custom_call.1} parent=35 // pred_check_branch
          %324 = sbr.rel (%p322) target = $region48
        $region47: #{tpu_custom_call.1} parent=35 // pred_region
          %325 = dma.done %s318, 2048
        $region48: #{tpu_custom_call.1} parent=35 // pred_fallthru
          _
        %s326 = sand.u32 %s140, 1
        %s327 = scalar_lea.sflag [#allocation12], %s326
        %s328 = sand.u32 %s140, 1
        %s329 = smul.addr %s328, 128
        %s330 = scalar_lea.vmem [#allocation11], %s329
        // Predicated region
        $region49: #{tpu_custom_call.1} parent=35 // pred_check
          %p331 = pneg %p153
        $region50: #{tpu_custom_call.1} parent=35 // pred_check_branch
          %333 = sbr.rel (%p331) target = $region52
        $region51: #{tpu_custom_call.1} parent=35 // pred_region
          %334 = dma.done %s327, 2048
        $region52: #{tpu_custom_call.1} parent=35 // pred_fallthru
          _
        %s335 = sand.u32 %s56, 1
        %s336 = scalar_lea.sflag [#allocation6], %s335
        %s337 = sand.u32 %s56, 1
        %s338 = smul.addr %s337, 128
        %s339 = scalar_lea.vmem [#allocation5], %s338
        %p340 = pneg %p69
        %p341 = pneg %p66
        %s342 = sand.u32 %s27, 1
        %s343 = scalar_lea.sflag [#allocation9], %s342
        %s344 = sand.u32 %s84, 1
        %s345 = smul.addr %s344, 128
        %s346 = scalar_lea.vmem [#allocation8], %s345
        %p347 = pneg %p97
        %p348 = pneg %p94
        %s349 = sand.u32 %s27, 1
        %s350 = scalar_lea.sflag [#allocation9], %s349
        %s351 = sand.u32 %s112, 1
        %s352 = smul.addr %s351, 128
        %s353 = scalar_lea.vmem [#allocation10], %s352
        %p354 = pneg %p125
        %p355 = pneg %p122
        %s356 = sand.u32 %s140, 1
        %s357 = scalar_lea.sflag [#allocation12], %s356
        %s358 = sand.u32 %s140, 1
        %s359 = smul.addr %s358, 128
        %s360 = scalar_lea.vmem [#allocation11], %s359
        %p361 = pneg %p153
        %p362 = pneg %p150
        %p363 = pneg %p181
        %p364 = pneg %p178
        %s365 = sand.u32 %s168, 1
        %s366 = scalar_lea.sflag [#allocation7], %s365
        %s367 = sand.u32 %s168, 1
        %s368 = smul.addr %s367, 128
        %s369 = scalar_lea.vmem [#allocation13], %s368
        %s370 = smul.u32 16, %s33
        %s371 = smul.u32 16, %s34
        %s372 = smul.u32 16, %s34
        %s373 = smul.u32 16, %s33
        %s374 = smul.u32 16, %s33
        %p375 = scmp.eq.s32.totalorder %s34, 0
        // Predicated region
        $region53: #{tpu_custom_call.1} parent=35 // pred_check
          %p376 = pneg %p375
        $region54: #{tpu_custom_call.1} parent=35 // pred_check_branch
          %378 = sbr.rel (%p376) target = $region56
        $region55: #{tpu_custom_call.1} parent=35 // pred_region
          %vm379 = vcmask 7168
          %380 = vst.msk [vmem:[#allocation2] sm:$0xff] %vm379, -inf
          %381 = vst.msk [vmem:[#allocation2 + $0x8] sm:$0xff] %vm379, -inf
          %382 = vst.msk [vmem:[#allocation2 + $0x10] sm:$0xff] %vm379, -inf
          %383 = vst.msk [vmem:[#allocation2 + $0x18] sm:$0xff] %vm379, -inf
          %384 = vst.msk [vmem:[#allocation2 + $0x20] sm:$0xff] %vm379, -inf
          %385 = vst.msk [vmem:[#allocation2 + $0x28] sm:$0xff] %vm379, -inf
          %386 = vst.msk [vmem:[#allocation2 + $0x30] sm:$0xff] %vm379, -inf
          %387 = vst.msk [vmem:[#allocation2 + $0x38] sm:$0xff] %vm379, -inf
          %388 = vst.msk [vmem:[#allocation2 + $0x40] sm:$0xff] %vm379, -inf
          %389 = vst.msk [vmem:[#allocation2 + $0x48] sm:$0xff] %vm379, -inf
          %390 = vst.msk [vmem:[#allocation2 + $0x50] sm:$0xff] %vm379, -inf
          %391 = vst.msk [vmem:[#allocation2 + $0x58] sm:$0xff] %vm379, -inf
          %392 = vst.msk [vmem:[#allocation2 + $0x60] sm:$0xff] %vm379, -inf
          %393 = vst.msk [vmem:[#allocation2 + $0x68] sm:$0xff] %vm379, -inf
          %394 = vst.msk [vmem:[#allocation2 + $0x70] sm:$0xff] %vm379, -inf
          %395 = vst.msk [vmem:[#allocation2 + $0x78] sm:$0xff] %vm379, -inf
          %396 = vst.msk [vmem:[#allocation3] sm:$0xff] %vm379, 0.0
          %397 = vst.msk [vmem:[#allocation3 + $0x8] sm:$0xff] %vm379, 0.0
          %398 = vst.msk [vmem:[#allocation3 + $0x10] sm:$0xff] %vm379, 0.0
          %399 = vst.msk [vmem:[#allocation3 + $0x18] sm:$0xff] %vm379, 0.0
          %400 = vst.msk [vmem:[#allocation3 + $0x20] sm:$0xff] %vm379, 0.0
          %401 = vst.msk [vmem:[#allocation3 + $0x28] sm:$0xff] %vm379, 0.0
          %402 = vst.msk [vmem:[#allocation3 + $0x30] sm:$0xff] %vm379, 0.0
          %403 = vst.msk [vmem:[#allocation3 + $0x38] sm:$0xff] %vm379, 0.0
          %404 = vst.msk [vmem:[#allocation3 + $0x40] sm:$0xff] %vm379, 0.0
          %405 = vst.msk [vmem:[#allocation3 + $0x48] sm:$0xff] %vm379, 0.0
          %406 = vst.msk [vmem:[#allocation3 + $0x50] sm:$0xff] %vm379, 0.0
          %407 = vst.msk [vmem:[#allocation3 + $0x58] sm:$0xff] %vm379, 0.0
          %408 = vst.msk [vmem:[#allocation3 + $0x60] sm:$0xff] %vm379, 0.0
          %409 = vst.msk [vmem:[#allocation3 + $0x68] sm:$0xff] %vm379, 0.0
          %410 = vst.msk [vmem:[#allocation3 + $0x70] sm:$0xff] %vm379, 0.0
          %411 = vst.msk [vmem:[#allocation3 + $0x78] sm:$0xff] %vm379, 0.0
          %412 = vst [vmem:[#allocation4] sm:$0xff] 0.0
          %413 = vst [vmem:[#allocation4 + $0x8] sm:$0xff] 0.0
          %414 = vst [vmem:[#allocation4 + $0x10] sm:$0xff] 0.0
          %415 = vst [vmem:[#allocation4 + $0x18] sm:$0xff] 0.0
          %416 = vst [vmem:[#allocation4 + $0x20] sm:$0xff] 0.0
          %417 = vst [vmem:[#allocation4 + $0x28] sm:$0xff] 0.0
          %418 = vst [vmem:[#allocation4 + $0x30] sm:$0xff] 0.0
          %419 = vst [vmem:[#allocation4 + $0x38] sm:$0xff] 0.0
          %420 = vst [vmem:[#allocation4 + $0x40] sm:$0xff] 0.0
          %421 = vst [vmem:[#allocation4 + $0x48] sm:$0xff] 0.0
          %422 = vst [vmem:[#allocation4 + $0x50] sm:$0xff] 0.0
          %423 = vst [vmem:[#allocation4 + $0x58] sm:$0xff] 0.0
          %424 = vst [vmem:[#allocation4 + $0x60] sm:$0xff] 0.0
          %425 = vst [vmem:[#allocation4 + $0x68] sm:$0xff] 0.0
          %426 = vst [vmem:[#allocation4 + $0x70] sm:$0xff] 0.0
          %427 = vst [vmem:[#allocation4 + $0x78] sm:$0xff] 0.0
        $region56: #{tpu_custom_call.1} parent=35 // pred_fallthru
          _
        %v428 = vld [vmem:[%s303] sm:$0xff]
        %v429 = vld [vmem:[%s303 + $0x8] sm:$0xff]
        %v430 = vld [vmem:[%s303 + $0x10] sm:$0xff]
        %v431 = vld [vmem:[%s303 + $0x18] sm:$0xff]
        %v432 = vld [vmem:[%s303 + $0x20] sm:$0xff]
        %v433 = vld [vmem:[%s303 + $0x28] sm:$0xff]
        %v434 = vld [vmem:[%s303 + $0x30] sm:$0xff]
        %v435 = vld [vmem:[%s303 + $0x38] sm:$0xff]
        %v436 = vld [vmem:[%s303 + $0x40] sm:$0xff]
        %v437 = vld [vmem:[%s303 + $0x48] sm:$0xff]
        %v438 = vld [vmem:[%s303 + $0x50] sm:$0xff]
        %v439 = vld [vmem:[%s303 + $0x58] sm:$0xff]
        %v440 = vld [vmem:[%s303 + $0x60] sm:$0xff]
        %v441 = vld [vmem:[%s303 + $0x68] sm:$0xff]
        %v442 = vld [vmem:[%s303 + $0x70] sm:$0xff]
        %v443 = vld [vmem:[%s303 + $0x78] sm:$0xff]
        %v444 = vmul.f32 %v428, 0.088388346
        %v445 = vmul.f32 %v429, 0.088388346
        %v446 = vmul.f32 %v430, 0.088388346
        %v447 = vmul.f32 %v431, 0.088388346
        %v448 = vmul.f32 %v432, 0.088388346
        %v449 = vmul.f32 %v433, 0.088388346
        %v450 = vmul.f32 %v434, 0.088388346
        %v451 = vmul.f32 %v435, 0.088388346
        %v452 = vmul.f32 %v436, 0.088388346
        %v453 = vmul.f32 %v437, 0.088388346
        %v454 = vmul.f32 %v438, 0.088388346
        %v455 = vmul.f32 %v439, 0.088388346
        %v456 = vmul.f32 %v440, 0.088388346
        %v457 = vmul.f32 %v441, 0.088388346
        %v458 = vmul.f32 %v442, 0.088388346
        %v459 = vmul.f32 %v443, 0.088388346
        %v460 = vld [vmem:[%s312] sm:$0xff]
        %v461 = vld [vmem:[%s312 + $0x8] sm:$0xff]
        %v462 = vld [vmem:[%s312 + $0x10] sm:$0xff]
        %v463 = vld [vmem:[%s312 + $0x18] sm:$0xff]
        %v464 = vld [vmem:[%s312 + $0x20] sm:$0xff]
        %v465 = vld [vmem:[%s312 + $0x28] sm:$0xff]
        %v466 = vld [vmem:[%s312 + $0x30] sm:$0xff]
        %v467 = vld [vmem:[%s312 + $0x38] sm:$0xff]
        %v468 = vld [vmem:[%s312 + $0x40] sm:$0xff]
        %v469 = vld [vmem:[%s312 + $0x48] sm:$0xff]
        %v470 = vld [vmem:[%s312 + $0x50] sm:$0xff]
        %v471 = vld [vmem:[%s312 + $0x58] sm:$0xff]
        %v472 = vld [vmem:[%s312 + $0x60] sm:$0xff]
        %v473 = vld [vmem:[%s312 + $0x68] sm:$0xff]
        %v474 = vld [vmem:[%s312 + $0x70] sm:$0xff]
        %v475 = vld [vmem:[%s312 + $0x78] sm:$0xff]
        %v476 = vld [vmem:[%s330] sm:$0xff]
        %v477 = vld [vmem:[%s330 + $0x8] sm:$0xff]
        %v478 = vld [vmem:[%s330 + $0x10] sm:$0xff]
        %v479 = vld [vmem:[%s330 + $0x18] sm:$0xff]
        %v480 = vld [vmem:[%s330 + $0x20] sm:$0xff]
        %v481 = vld [vmem:[%s330 + $0x28] sm:$0xff]
        %v482 = vld [vmem:[%s330 + $0x30] sm:$0xff]
        %v483 = vld [vmem:[%s330 + $0x38] sm:$0xff]
        %v484 = vld [vmem:[%s330 + $0x40] sm:$0xff]
        %v485 = vld [vmem:[%s330 + $0x48] sm:$0xff]
        %v486 = vld [vmem:[%s330 + $0x50] sm:$0xff]
        %v487 = vld [vmem:[%s330 + $0x58] sm:$0xff]
        %v488 = vld [vmem:[%s330 + $0x60] sm:$0xff]
        %v489 = vld [vmem:[%s330 + $0x68] sm:$0xff]
        %v490 = vld [vmem:[%s330 + $0x70] sm:$0xff]
        %v491 = vld [vmem:[%s330 + $0x78] sm:$0xff]
        %492 = vmatprep.subr.mxu0 0.0
        %493 = vmatpush1.xpose.msra.mxu0 %v475
        %494 = vmatprep.subr.mxu0 0.0
        %495 = vmatpush1.xpose.msra.mxu0 %v474
        %496 = vmatprep.subr.mxu0 0.0
        %497 = vmatpush1.xpose.msra.mxu0 %v473
        %498 = vmatprep.subr.mxu0 0.0
        %499 = vmatpush1.xpose.msra.mxu0 %v472
        %500 = vmatprep.subr.mxu0 0.0
        %501 = vmatpush1.xpose.msra.mxu0 %v471
        %502 = vmatprep.subr.mxu0 0.0
        %503 = vmatpush1.xpose.msra.mxu0 %v470
        %504 = vmatprep.subr.mxu0 0.0
        %505 = vmatpush1.xpose.msra.mxu0 %v469
        %506 = vmatprep.subr.mxu0 0.0
        %507 = vmatpush1.xpose.msra.mxu0 %v468
        %508 = vmatprep.subr.mxu0 0.0
        %509 = vmatpush1.xpose.msra.mxu0 %v467
        %510 = vmatprep.subr.mxu0 0.0
        %511 = vmatpush1.xpose.msra.mxu0 %v466
        %512 = vmatprep.subr.mxu0 0.0
        %513 = vmatpush1.xpose.msra.mxu0 %v465
        %514 = vmatprep.subr.mxu0 0.0
        %515 = vmatpush1.xpose.msra.mxu0 %v464
        %516 = vmatprep.subr.mxu0 0.0
        %517 = vmatpush1.xpose.msra.mxu0 %v463
        %518 = vmatprep.subr.mxu0 0.0
        %519 = vmatpush1.xpose.msra.mxu0 %v462
        %520 = vmatprep.subr.mxu0 0.0
        %521 = vmatpush1.xpose.msra.mxu0 %v461
        %522 = vmatprep.subr.mxu0 0.0
        %523 = vmatpush1.xpose.msra.mxu0 %v460
        %524 = vmatprep.subr.mxu0 0.0
        %525 = vmatpush2.xpose.msra.mxu0 0.0
        %526 = vmatprep.subr.mxu0 0.0
        %527 = vmatpush2.xpose.msra.mxu0 0.0
        %528 = vmatprep.subr.mxu0 0.0
        %529 = vmatpush2.xpose.msra.mxu0 0.0
        %530 = vmatprep.subr.mxu0 0.0
        %531 = vmatpush2.xpose.msra.mxu0 0.0
        %532 = vmatprep.subr.mxu0 0.0
        %533 = vmatpush2.xpose.msra.mxu0 0.0
        %534 = vmatprep.subr.mxu0 0.0
        %535 = vmatpush2.xpose.msra.mxu0 0.0
        %536 = vmatprep.subr.mxu0 0.0
        %537 = vmatpush2.xpose.msra.mxu0 0.0
        %538 = vmatprep.subr.mxu0 0.0
        %539 = vmatpush2.xpose.msra.mxu0 0.0
        %540 = vmatprep.subr.mxu0 0.0
        %541 = vmatpush2.xpose.msra.mxu0 0.0
        %542 = vmatprep.subr.mxu0 0.0
        %543 = vmatpush2.xpose.msra.mxu0 0.0
        %544 = vmatprep.subr.mxu0 0.0
        %545 = vmatpush2.xpose.msra.mxu0 0.0
        %546 = vmatprep.subr.mxu0 0.0
        %547 = vmatpush2.xpose.msra.mxu0 0.0
        %548 = vmatprep.subr.mxu0 0.0
        %549 = vmatpush2.xpose.msra.mxu0 0.0
        %550 = vmatprep.subr.mxu0 0.0
        %551 = vmatpush2.xpose.msra.mxu0 0.0
        %552 = vmatprep.subr.mxu0 0.0
        %553 = vmatpush2.xpose.msra.mxu0 0.0
        %554 = vmatprep.subr.mxu0 0.0
        %555 = vmatpush2.xpose.msra.mxu0 0.0
        %556 = vmatprep.mubr.f32.mxu0 0.0
        %557 = vmatmul.mubr.f32.gmra.mxu0 %v444
        %v558 = vpop.f32.mrf.mxu0
        %v559 = vadd.f32 %v476, %v558
        %v560 = vpop.f32.mrf.mxu0
        %561 = vmatprep.mubr.f32.mxu0 0.0
        %562 = vmatmul.mubr.f32.gmra.mxu0 %v445
        %v563 = vpop.f32.mrf.mxu0
        %v564 = vadd.f32 %v477, %v563
        %v565 = vpop.f32.mrf.mxu0
        %566 = vmatprep.mubr.f32.mxu0 0.0
        %567 = vmatmul.mubr.f32.gmra.mxu0 %v446
        %v568 = vpop.f32.mrf.mxu0
        %v569 = vadd.f32 %v478, %v568
        %v570 = vpop.f32.mrf.mxu0
        %571 = vmatprep.mubr.f32.mxu0 0.0
        %572 = vmatmul.mubr.f32.gmra.mxu0 %v447
        %v573 = vpop.f32.mrf.mxu0
        %v574 = vadd.f32 %v479, %v573
        %v575 = vpop.f32.mrf.mxu0
        %576 = vmatprep.mubr.f32.mxu0 0.0
        %577 = vmatmul.mubr.f32.gmra.mxu0 %v448
        %v578 = vpop.f32.mrf.mxu0
        %v579 = vadd.f32 %v480, %v578
        %v580 = vpop.f32.mrf.mxu0
        %581 = vmatprep.mubr.f32.mxu0 0.0
        %582 = vmatmul.mubr.f32.gmra.mxu0 %v449
        %v583 = vpop.f32.mrf.mxu0
        %v584 = vadd.f32 %v481, %v583
        %v585 = vpop.f32.mrf.mxu0
        %586 = vmatprep.mubr.f32.mxu0 0.0
        %587 = vmatmul.mubr.f32.gmra.mxu0 %v450
        %v588 = vpop.f32.mrf.mxu0
        %v589 = vadd.f32 %v482, %v588
        %v590 = vpop.f32.mrf.mxu0
        %591 = vmatprep.mubr.f32.mxu0 0.0
        %592 = vmatmul.mubr.f32.gmra.mxu0 %v451
        %v593 = vpop.f32.mrf.mxu0
        %v594 = vadd.f32 %v483, %v593
        %v595 = vpop.f32.mrf.mxu0
        %596 = vmatprep.mubr.f32.mxu0 0.0
        %597 = vmatmul.mubr.f32.gmra.mxu0 %v452
        %v598 = vpop.f32.mrf.mxu0
        %v599 = vadd.f32 %v484, %v598
        %v600 = vpop.f32.mrf.mxu0
        %601 = vmatprep.mubr.f32.mxu0 0.0
        %602 = vmatmul.mubr.f32.gmra.mxu0 %v453
        %v603 = vpop.f32.mrf.mxu0
        %v604 = vadd.f32 %v485, %v603
        %v605 = vpop.f32.mrf.mxu0
        %606 = vmatprep.mubr.f32.mxu0 0.0
        %607 = vmatmul.mubr.f32.gmra.mxu0 %v454
        %v608 = vpop.f32.mrf.mxu0
        %v609 = vadd.f32 %v486, %v608
        %v610 = vpop.f32.mrf.mxu0
        %611 = vmatprep.mubr.f32.mxu0 0.0
        %612 = vmatmul.mubr.f32.gmra.mxu0 %v455
        %v613 = vpop.f32.mrf.mxu0
        %v614 = vadd.f32 %v487, %v613
        %v615 = vpop.f32.mrf.mxu0
        %616 = vmatprep.mubr.f32.mxu0 0.0
        %617 = vmatmul.mubr.f32.gmra.mxu0 %v456
        %v618 = vpop.f32.mrf.mxu0
        %v619 = vadd.f32 %v488, %v618
        %v620 = vpop.f32.mrf.mxu0
        %621 = vmatprep.mubr.f32.mxu0 0.0
        %622 = vmatmul.mubr.f32.gmra.mxu0 %v457
        %v623 = vpop.f32.mrf.mxu0
        %v624 = vadd.f32 %v489, %v623
        %v625 = vpop.f32.mrf.mxu0
        %626 = vmatprep.mubr.f32.mxu0 0.0
        %627 = vmatmul.mubr.f32.gmra.mxu0 %v458
        %v628 = vpop.f32.mrf.mxu0
        %v629 = vadd.f32 %v490, %v628
        %v630 = vpop.f32.mrf.mxu0
        %631 = vmatprep.mubr.f32.mxu0 0.0
        %632 = vmatmul.mubr.f32.gmra.mxu0 %v459
        %v633 = vpop.f32.mrf.mxu0
        %v634 = vadd.f32 %v491, %v633
        %v635 = vpop.f32.mrf.mxu0
        %636 = vdwg.mxu0
        %v637 = vld [vmem:[#allocation2] sm:$0xff]
        %v638 = vld [vmem:[#allocation2 + $0x8] sm:$0xff]
        %v639 = vld [vmem:[#allocation2 + $0x10] sm:$0xff]
        %v640 = vld [vmem:[#allocation2 + $0x18] sm:$0xff]
        %v641 = vld [vmem:[#allocation2 + $0x20] sm:$0xff]
        %v642 = vld [vmem:[#allocation2 + $0x28] sm:$0xff]
        %v643 = vld [vmem:[#allocation2 + $0x30] sm:$0xff]
        %v644 = vld [vmem:[#allocation2 + $0x38] sm:$0xff]
        %v645 = vld [vmem:[#allocation2 + $0x40] sm:$0xff]
        %v646 = vld [vmem:[#allocation2 + $0x48] sm:$0xff]
        %v647 = vld [vmem:[#allocation2 + $0x50] sm:$0xff]
        %v648 = vld [vmem:[#allocation2 + $0x58] sm:$0xff]
        %v649 = vld [vmem:[#allocation2 + $0x60] sm:$0xff]
        %v650 = vld [vmem:[#allocation2 + $0x68] sm:$0xff]
        %v651 = vld [vmem:[#allocation2 + $0x70] sm:$0xff]
        %v652 = vld [vmem:[#allocation2 + $0x78] sm:$0xff]
        %653 = vmax.xlane.f32.xlu0 %v559
        %v654 = vpop.xlane.xlu0 %653
        %655 = vmax.xlane.f32.xlu0 %v564
        %v656 = vpop.xlane.xlu0 %655
        %657 = vmax.xlane.f32.xlu0 %v569
        %v658 = vpop.xlane.xlu0 %657
        %659 = vmax.xlane.f32.xlu0 %v574
        %v660 = vpop.xlane.xlu0 %659
        %661 = vmax.xlane.f32.xlu0 %v579
        %v662 = vpop.xlane.xlu0 %661
        %663 = vmax.xlane.f32.xlu0 %v584
        %v664 = vpop.xlane.xlu0 %663
        %665 = vmax.xlane.f32.xlu0 %v589
        %v666 = vpop.xlane.xlu0 %665
        %667 = vmax.xlane.f32.xlu0 %v594
        %v668 = vpop.xlane.xlu0 %667
        %669 = vmax.xlane.f32.xlu0 %v599
        %v670 = vpop.xlane.xlu0 %669
        %671 = vmax.xlane.f32.xlu0 %v604
        %v672 = vpop.xlane.xlu0 %671
        %673 = vmax.xlane.f32.xlu0 %v609
        %v674 = vpop.xlane.xlu0 %673
        %675 = vmax.xlane.f32.xlu0 %v614
        %v676 = vpop.xlane.xlu0 %675
        %677 = vmax.xlane.f32.xlu0 %v619
        %v678 = vpop.xlane.xlu0 %677
        %679 = vmax.xlane.f32.xlu0 %v624
        %v680 = vpop.xlane.xlu0 %679
        %681 = vmax.xlane.f32.xlu0 %v629
        %v682 = vpop.xlane.xlu0 %681
        %683 = vmax.xlane.f32.xlu0 %v634
        %v684 = vpop.xlane.xlu0 %683
        %v685 = vmax.f32 %v637, %v654
        %v686 = vmax.f32 %v638, %v656
        %v687 = vmax.f32 %v639, %v658
        %v688 = vmax.f32 %v640, %v660
        %v689 = vmax.f32 %v641, %v662
        %v690 = vmax.f32 %v642, %v664
        %v691 = vmax.f32 %v643, %v666
        %v692 = vmax.f32 %v644, %v668
        %v693 = vmax.f32 %v645, %v670
        %v694 = vmax.f32 %v646, %v672
        %v695 = vmax.f32 %v647, %v674
        %v696 = vmax.f32 %v648, %v676
        %v697 = vmax.f32 %v649, %v678
        %v698 = vmax.f32 %v650, %v680
        %v699 = vmax.f32 %v651, %v682
        %v700 = vmax.f32 %v652, %v684
        %v701 = vsub.f32 %v637, %v685
        %v702 = vsub.f32 %v638, %v686
        %v703 = vsub.f32 %v639, %v687
        %v704 = vsub.f32 %v640, %v688
        %v705 = vsub.f32 %v641, %v689
        %v706 = vsub.f32 %v642, %v690
        %v707 = vsub.f32 %v643, %v691
        %v708 = vsub.f32 %v644, %v692
        %v709 = vsub.f32 %v645, %v693
        %v710 = vsub.f32 %v646, %v694
        %v711 = vsub.f32 %v647, %v695
        %v712 = vsub.f32 %v648, %v696
        %v713 = vsub.f32 %v649, %v697
        %v714 = vsub.f32 %v650, %v698
        %v715 = vsub.f32 %v651, %v699
        %v716 = vsub.f32 %v652, %v700
        %v717 = vmul.f32 %v701, 1.442695
        %v718 = vpow.pop %v717
        %v719 = vmul.f32 %v702, 1.442695
        %v720 = vpow.pop %v719
        %v721 = vmul.f32 %v703, 1.442695
        %v722 = vpow.pop %v721
        %v723 = vmul.f32 %v704, 1.442695
        %v724 = vpow.pop %v723
        %v725 = vmul.f32 %v705, 1.442695
        %v726 = vpow.pop %v725
        %v727 = vmul.f32 %v706, 1.442695
        %v728 = vpow.pop %v727
        %v729 = vmul.f32 %v707, 1.442695
        %v730 = vpow.pop %v729
        %v731 = vmul.f32 %v708, 1.442695
        %v732 = vpow.pop %v731
        %v733 = vmul.f32 %v709, 1.442695
        %v734 = vpow.pop %v733
        %v735 = vmul.f32 %v710, 1.442695
        %v736 = vpow.pop %v735
        %v737 = vmul.f32 %v711, 1.442695
        %v738 = vpow.pop %v737
        %v739 = vmul.f32 %v712, 1.442695
        %v740 = vpow.pop %v739
        %v741 = vmul.f32 %v713, 1.442695
        %v742 = vpow.pop %v741
        %v743 = vmul.f32 %v714, 1.442695
        %v744 = vpow.pop %v743
        %v745 = vmul.f32 %v715, 1.442695
        %v746 = vpow.pop %v745
        %v747 = vmul.f32 %v716, 1.442695
        %v748 = vpow.pop %v747
        %750 = vset.pattern.permute.xlu0 0
        %751 = vperm.xlu0 %750, %v685
        %v752 = vpop.permute.xlu0 %751
        %755 = vset.pattern.permute.xlu0 0
        %756 = vperm.xlu0 %755, %v686
        %v757 = vpop.permute.xlu0 %756
        %760 = vset.pattern.permute.xlu0 0
        %761 = vperm.xlu0 %760, %v687
        %v762 = vpop.permute.xlu0 %761
        %765 = vset.pattern.permute.xlu0 0
        %766 = vperm.xlu0 %765, %v688
        %v767 = vpop.permute.xlu0 %766
        %770 = vset.pattern.permute.xlu0 0
        %771 = vperm.xlu0 %770, %v689
        %v772 = vpop.permute.xlu0 %771
        %775 = vset.pattern.permute.xlu0 0
        %776 = vperm.xlu0 %775, %v690
        %v777 = vpop.permute.xlu0 %776
        %780 = vset.pattern.permute.xlu0 0
        %781 = vperm.xlu0 %780, %v691
        %v782 = vpop.permute.xlu0 %781
        %785 = vset.pattern.permute.xlu0 0
        %786 = vperm.xlu0 %785, %v692
        %v787 = vpop.permute.xlu0 %786
        %790 = vset.pattern.permute.xlu0 0
        %791 = vperm.xlu0 %790, %v693
        %v792 = vpop.permute.xlu0 %791
        %795 = vset.pattern.permute.xlu0 0
        %796 = vperm.xlu0 %795, %v694
        %v797 = vpop.permute.xlu0 %796
        %800 = vset.pattern.permute.xlu0 0
        %801 = vperm.xlu0 %800, %v695
        %v802 = vpop.permute.xlu0 %801
        %805 = vset.pattern.permute.xlu0 0
        %806 = vperm.xlu0 %805, %v696
        %v807 = vpop.permute.xlu0 %806
        %810 = vset.pattern.permute.xlu0 0
        %811 = vperm.xlu0 %810, %v697
        %v812 = vpop.permute.xlu0 %811
        %815 = vset.pattern.permute.xlu0 0
        %816 = vperm.xlu0 %815, %v698
        %v817 = vpop.permute.xlu0 %816
        %820 = vset.pattern.permute.xlu0 0
        %821 = vperm.xlu0 %820, %v699
        %v822 = vpop.permute.xlu0 %821
        %825 = vset.pattern.permute.xlu0 0
        %826 = vperm.xlu0 %825, %v700
        %v827 = vpop.permute.xlu0 %826
        %v829 = vsub.f32 %v559, %v752
        %v830 = vsub.f32 %v564, %v757
        %v831 = vsub.f32 %v569, %v762
        %v832 = vsub.f32 %v574, %v767
        %v833 = vsub.f32 %v579, %v772
        %v834 = vsub.f32 %v584, %v777
        %v835 = vsub.f32 %v589, %v782
        %v836 = vsub.f32 %v594, %v787
        %v837 = vsub.f32 %v599, %v792
        %v838 = vsub.f32 %v604, %v797
        %v839 = vsub.f32 %v609, %v802
        %v840 = vsub.f32 %v614, %v807
        %v841 = vsub.f32 %v619, %v812
        %v842 = vsub.f32 %v624, %v817
        %v843 = vsub.f32 %v629, %v822
        %v844 = vsub.f32 %v634, %v827
        %v845 = vmul.f32 %v829, 1.442695
        %v846 = vpow.pop %v845
        %v847 = vmul.f32 %v830, 1.442695
        %v848 = vpow.pop %v847
        %v849 = vmul.f32 %v831, 1.442695
        %v850 = vpow.pop %v849
        %v851 = vmul.f32 %v832, 1.442695
        %v852 = vpow.pop %v851
        %v853 = vmul.f32 %v833, 1.442695
        %v854 = vpow.pop %v853
        %v855 = vmul.f32 %v834, 1.442695
        %v856 = vpow.pop %v855
        %v857 = vmul.f32 %v835, 1.442695
        %v858 = vpow.pop %v857
        %v859 = vmul.f32 %v836, 1.442695
        %v860 = vpow.pop %v859
        %v861 = vmul.f32 %v837, 1.442695
        %v862 = vpow.pop %v861
        %v863 = vmul.f32 %v838, 1.442695
        %v864 = vpow.pop %v863
        %v865 = vmul.f32 %v839, 1.442695
        %v866 = vpow.pop %v865
        %v867 = vmul.f32 %v840, 1.442695
        %v868 = vpow.pop %v867
        %v869 = vmul.f32 %v841, 1.442695
        %v870 = vpow.pop %v869
        %v871 = vmul.f32 %v842, 1.442695
        %v872 = vpow.pop %v871
        %v873 = vmul.f32 %v843, 1.442695
        %v874 = vpow.pop %v873
        %v875 = vmul.f32 %v844, 1.442695
        %v876 = vpow.pop %v875
        %v877 = vld [vmem:[#allocation3] sm:$0xff]
        %v878 = vld [vmem:[#allocation3 + $0x8] sm:$0xff]
        %v879 = vld [vmem:[#allocation3 + $0x10] sm:$0xff]
        %v880 = vld [vmem:[#allocation3 + $0x18] sm:$0xff]
        %v881 = vld [vmem:[#allocation3 + $0x20] sm:$0xff]
        %v882 = vld [vmem:[#allocation3 + $0x28] sm:$0xff]
        %v883 = vld [vmem:[#allocation3 + $0x30] sm:$0xff]
        %v884 = vld [vmem:[#allocation3 + $0x38] sm:$0xff]
        %v885 = vld [vmem:[#allocation3 + $0x40] sm:$0xff]
        %v886 = vld [vmem:[#allocation3 + $0x48] sm:$0xff]
        %v887 = vld [vmem:[#allocation3 + $0x50] sm:$0xff]
        %v888 = vld [vmem:[#allocation3 + $0x58] sm:$0xff]
        %v889 = vld [vmem:[#allocation3 + $0x60] sm:$0xff]
        %v890 = vld [vmem:[#allocation3 + $0x68] sm:$0xff]
        %v891 = vld [vmem:[#allocation3 + $0x70] sm:$0xff]
        %v892 = vld [vmem:[#allocation3 + $0x78] sm:$0xff]
        %v893 = vmul.f32 %v718, %v877
        %v894 = vmul.f32 %v720, %v878
        %v895 = vmul.f32 %v722, %v879
        %v896 = vmul.f32 %v724, %v880
        %v897 = vmul.f32 %v726, %v881
        %v898 = vmul.f32 %v728, %v882
        %v899 = vmul.f32 %v730, %v883
        %v900 = vmul.f32 %v732, %v884
        %v901 = vmul.f32 %v734, %v885
        %v902 = vmul.f32 %v736, %v886
        %v903 = vmul.f32 %v738, %v887
        %v904 = vmul.f32 %v740, %v888
        %v905 = vmul.f32 %v742, %v889
        %v906 = vmul.f32 %v744, %v890
        %v907 = vmul.f32 %v746, %v891
        %v908 = vmul.f32 %v748, %v892
        %909 = vadd.xlane.f32.xlu0 %v846
        %v910 = vpop.xlane.xlu0 %909
        %911 = vadd.xlane.f32.xlu0 %v848
        %v912 = vpop.xlane.xlu0 %911
        %913 = vadd.xlane.f32.xlu0 %v850
        %v914 = vpop.xlane.xlu0 %913
        %915 = vadd.xlane.f32.xlu0 %v852
        %v916 = vpop.xlane.xlu0 %915
        %917 = vadd.xlane.f32.xlu0 %v854
        %v918 = vpop.xlane.xlu0 %917
        %919 = vadd.xlane.f32.xlu0 %v856
        %v920 = vpop.xlane.xlu0 %919
        %921 = vadd.xlane.f32.xlu0 %v858
        %v922 = vpop.xlane.xlu0 %921
        %923 = vadd.xlane.f32.xlu0 %v860
        %v924 = vpop.xlane.xlu0 %923
        %925 = vadd.xlane.f32.xlu0 %v862
        %v926 = vpop.xlane.xlu0 %925
        %927 = vadd.xlane.f32.xlu0 %v864
        %v928 = vpop.xlane.xlu0 %927
        %929 = vadd.xlane.f32.xlu0 %v866
        %v930 = vpop.xlane.xlu0 %929
        %931 = vadd.xlane.f32.xlu0 %v868
        %v932 = vpop.xlane.xlu0 %931
        %933 = vadd.xlane.f32.xlu0 %v870
        %v934 = vpop.xlane.xlu0 %933
        %935 = vadd.xlane.f32.xlu0 %v872
        %v936 = vpop.xlane.xlu0 %935
        %937 = vadd.xlane.f32.xlu0 %v874
        %v938 = vpop.xlane.xlu0 %937
        %939 = vadd.xlane.f32.xlu0 %v876
        %v940 = vpop.xlane.xlu0 %939
        %v941 = vadd.f32 %v893, %v910
        %v942 = vadd.f32 %v894, %v912
        %v943 = vadd.f32 %v895, %v914
        %v944 = vadd.f32 %v896, %v916
        %v945 = vadd.f32 %v897, %v918
        %v946 = vadd.f32 %v898, %v920
        %v947 = vadd.f32 %v899, %v922
        %v948 = vadd.f32 %v900, %v924
        %v949 = vadd.f32 %v901, %v926
        %v950 = vadd.f32 %v902, %v928
        %v951 = vadd.f32 %v903, %v930
        %v952 = vadd.f32 %v904, %v932
        %v953 = vadd.f32 %v905, %v934
        %v954 = vadd.f32 %v906, %v936
        %v955 = vadd.f32 %v907, %v938
        %v956 = vadd.f32 %v908, %v940
        %vm957 = vcmask 7168
        %958 = vst.msk [vmem:[#allocation3] sm:$0xff] %vm957, %v941
        %959 = vst.msk [vmem:[#allocation3 + $0x8] sm:$0xff] %vm957, %v942
        %960 = vst.msk [vmem:[#allocation3 + $0x10] sm:$0xff] %vm957, %v943
        %961 = vst.msk [vmem:[#allocation3 + $0x18] sm:$0xff] %vm957, %v944
        %962 = vst.msk [vmem:[#allocation3 + $0x20] sm:$0xff] %vm957, %v945
        %963 = vst.msk [vmem:[#allocation3 + $0x28] sm:$0xff] %vm957, %v946
        %964 = vst.msk [vmem:[#allocation3 + $0x30] sm:$0xff] %vm957, %v947
        %965 = vst.msk [vmem:[#allocation3 + $0x38] sm:$0xff] %vm957, %v948
        %966 = vst.msk [vmem:[#allocation3 + $0x40] sm:$0xff] %vm957, %v949
        %967 = vst.msk [vmem:[#allocation3 + $0x48] sm:$0xff] %vm957, %v950
        %968 = vst.msk [vmem:[#allocation3 + $0x50] sm:$0xff] %vm957, %v951
        %969 = vst.msk [vmem:[#allocation3 + $0x58] sm:$0xff] %vm957, %v952
        %970 = vst.msk [vmem:[#allocation3 + $0x60] sm:$0xff] %vm957, %v953
        %971 = vst.msk [vmem:[#allocation3 + $0x68] sm:$0xff] %vm957, %v954
        %972 = vst.msk [vmem:[#allocation3 + $0x70] sm:$0xff] %vm957, %v955
        %973 = vst.msk [vmem:[#allocation3 + $0x78] sm:$0xff] %vm957, %v956
        %v974 = vld [vmem:[#allocation4] sm:$0xff]
        %v975 = vld [vmem:[#allocation4 + $0x8] sm:$0xff]
        %v976 = vld [vmem:[#allocation4 + $0x10] sm:$0xff]
        %v977 = vld [vmem:[#allocation4 + $0x18] sm:$0xff]
        %v978 = vld [vmem:[#allocation4 + $0x20] sm:$0xff]
        %v979 = vld [vmem:[#allocation4 + $0x28] sm:$0xff]
        %v980 = vld [vmem:[#allocation4 + $0x30] sm:$0xff]
        %v981 = vld [vmem:[#allocation4 + $0x38] sm:$0xff]
        %v982 = vld [vmem:[#allocation4 + $0x40] sm:$0xff]
        %v983 = vld [vmem:[#allocation4 + $0x48] sm:$0xff]
        %v984 = vld [vmem:[#allocation4 + $0x50] sm:$0xff]
        %v985 = vld [vmem:[#allocation4 + $0x58] sm:$0xff]
        %v986 = vld [vmem:[#allocation4 + $0x60] sm:$0xff]
        %v987 = vld [vmem:[#allocation4 + $0x68] sm:$0xff]
        %v988 = vld [vmem:[#allocation4 + $0x70] sm:$0xff]
        %v989 = vld [vmem:[#allocation4 + $0x78] sm:$0xff]
        %991 = vset.pattern.permute.xlu0 0
        %992 = vperm.xlu0 %991, %v718
        %v993 = vpop.permute.xlu0 %992
        %996 = vset.pattern.permute.xlu0 0
        %997 = vperm.xlu0 %996, %v720
        %v998 = vpop.permute.xlu0 %997
        %1001 = vset.pattern.permute.xlu0 0
        %1002 = vperm.xlu0 %1001, %v722
        %v1003 = vpop.permute.xlu0 %1002
        %1006 = vset.pattern.permute.xlu0 0
        %1007 = vperm.xlu0 %1006, %v724
        %v1008 = vpop.permute.xlu0 %1007
        %1011 = vset.pattern.permute.xlu0 0
        %1012 = vperm.xlu0 %1011, %v726
        %v1013 = vpop.permute.xlu0 %1012
        %1016 = vset.pattern.permute.xlu0 0
        %1017 = vperm.xlu0 %1016, %v728
        %v1018 = vpop.permute.xlu0 %1017
        %1021 = vset.pattern.permute.xlu0 0
        %1022 = vperm.xlu0 %1021, %v730
        %v1023 = vpop.permute.xlu0 %1022
        %1026 = vset.pattern.permute.xlu0 0
        %1027 = vperm.xlu0 %1026, %v732
        %v1028 = vpop.permute.xlu0 %1027
        %1031 = vset.pattern.permute.xlu0 0
        %1032 = vperm.xlu0 %1031, %v734
        %v1033 = vpop.permute.xlu0 %1032
        %1036 = vset.pattern.permute.xlu0 0
        %1037 = vperm.xlu0 %1036, %v736
        %v1038 = vpop.permute.xlu0 %1037
        %1041 = vset.pattern.permute.xlu0 0
        %1042 = vperm.xlu0 %1041, %v738
        %v1043 = vpop.permute.xlu0 %1042
        %1046 = vset.pattern.permute.xlu0 0
        %1047 = vperm.xlu0 %1046, %v740
        %v1048 = vpop.permute.xlu0 %1047
        %1051 = vset.pattern.permute.xlu0 0
        %1052 = vperm.xlu0 %1051, %v742
        %v1053 = vpop.permute.xlu0 %1052
        %1056 = vset.pattern.permute.xlu0 0
        %1057 = vperm.xlu0 %1056, %v744
        %v1058 = vpop.permute.xlu0 %1057
        %1061 = vset.pattern.permute.xlu0 0
        %1062 = vperm.xlu0 %1061, %v746
        %v1063 = vpop.permute.xlu0 %1062
        %1066 = vset.pattern.permute.xlu0 0
        %1067 = vperm.xlu0 %1066, %v748
        %v1068 = vpop.permute.xlu0 %1067
        %v1070 = vmul.f32 %v993, %v974
        %v1071 = vmul.f32 %v998, %v975
        %v1072 = vmul.f32 %v1003, %v976
        %v1073 = vmul.f32 %v1008, %v977
        %v1074 = vmul.f32 %v1013, %v978
        %v1075 = vmul.f32 %v1018, %v979
        %v1076 = vmul.f32 %v1023, %v980
        %v1077 = vmul.f32 %v1028, %v981
        %v1078 = vmul.f32 %v1033, %v982
        %v1079 = vmul.f32 %v1038, %v983
        %v1080 = vmul.f32 %v1043, %v984
        %v1081 = vmul.f32 %v1048, %v985
        %v1082 = vmul.f32 %v1053, %v986
        %v1083 = vmul.f32 %v1058, %v987
        %v1084 = vmul.f32 %v1063, %v988
        %v1085 = vmul.f32 %v1068, %v989
        %v1086 = vld [vmem:[%s321] sm:$0xff]
        %v1087 = vld [vmem:[%s321 + $0x8] sm:$0xff]
        %v1088 = vld [vmem:[%s321 + $0x10] sm:$0xff]
        %v1089 = vld [vmem:[%s321 + $0x18] sm:$0xff]
        %v1090 = vld [vmem:[%s321 + $0x20] sm:$0xff]
        %v1091 = vld [vmem:[%s321 + $0x28] sm:$0xff]
        %v1092 = vld [vmem:[%s321 + $0x30] sm:$0xff]
        %v1093 = vld [vmem:[%s321 + $0x38] sm:$0xff]
        %v1094 = vld [vmem:[%s321 + $0x40] sm:$0xff]
        %v1095 = vld [vmem:[%s321 + $0x48] sm:$0xff]
        %v1096 = vld [vmem:[%s321 + $0x50] sm:$0xff]
        %v1097 = vld [vmem:[%s321 + $0x58] sm:$0xff]
        %v1098 = vld [vmem:[%s321 + $0x60] sm:$0xff]
        %v1099 = vld [vmem:[%s321 + $0x68] sm:$0xff]
        %v1100 = vld [vmem:[%s321 + $0x70] sm:$0xff]
        %v1101 = vld [vmem:[%s321 + $0x78] sm:$0xff]
        %1102 = vmatprep.subr.mxu0 0.0
        %1103 = vmatpush1.msra.mxu0 %v1101
        %1104 = vmatprep.subr.mxu0 0.0
        %1105 = vmatpush1.msra.mxu0 %v1100
        %1106 = vmatprep.subr.mxu0 0.0
        %1107 = vmatpush1.msra.mxu0 %v1099
        %1108 = vmatprep.subr.mxu0 0.0
        %1109 = vmatpush1.msra.mxu0 %v1098
        %1110 = vmatprep.subr.mxu0 0.0
        %1111 = vmatpush1.msra.mxu0 %v1097
        %1112 = vmatprep.subr.mxu0 0.0
        %1113 = vmatpush1.msra.mxu0 %v1096
        %1114 = vmatprep.subr.mxu0 0.0
        %1115 = vmatpush1.msra.mxu0 %v1095
        %1116 = vmatprep.subr.mxu0 0.0
        %1117 = vmatpush1.msra.mxu0 %v1094
        %1118 = vmatprep.subr.mxu0 0.0
        %1119 = vmatpush1.msra.mxu0 %v1093
        %1120 = vmatprep.subr.mxu0 0.0
        %1121 = vmatpush1.msra.mxu0 %v1092
        %1122 = vmatprep.subr.mxu0 0.0
        %1123 = vmatpush1.msra.mxu0 %v1091
        %1124 = vmatprep.subr.mxu0 0.0
        %1125 = vmatpush1.msra.mxu0 %v1090
        %1126 = vmatprep.subr.mxu0 0.0
        %1127 = vmatpush1.msra.mxu0 %v1089
        %1128 = vmatprep.subr.mxu0 0.0
        %1129 = vmatpush1.msra.mxu0 %v1088
        %1130 = vmatprep.subr.mxu0 0.0
        %1131 = vmatpush1.msra.mxu0 %v1087
        %1132 = vmatprep.subr.mxu0 0.0
        %1133 = vmatpush1.msra.mxu0 %v1086
        %1134 = vmatprep.subr.mxu0 0.0
        %1135 = vmatpush2.msra.mxu0 0.0
        %1136 = vmatprep.subr.mxu0 0.0
        %1137 = vmatpush2.msra.mxu0 0.0
        %1138 = vmatprep.subr.mxu0 0.0
        %1139 = vmatpush2.msra.mxu0 0.0
        %1140 = vmatprep.subr.mxu0 0.0
        %1141 = vmatpush2.msra.mxu0 0.0
        %1142 = vmatprep.subr.mxu0 0.0
        %1143 = vmatpush2.msra.mxu0 0.0
        %1144 = vmatprep.subr.mxu0 0.0
        %1145 = vmatpush2.msra.mxu0 0.0
        %1146 = vmatprep.subr.mxu0 0.0
        %1147 = vmatpush2.msra.mxu0 0.0
        %1148 = vmatprep.subr.mxu0 0.0
        %1149 = vmatpush2.msra.mxu0 0.0
        %1150 = vmatprep.subr.mxu0 0.0
        %1151 = vmatpush2.msra.mxu0 0.0
        %1152 = vmatprep.subr.mxu0 0.0
        %1153 = vmatpush2.msra.mxu0 0.0
        %1154 = vmatprep.subr.mxu0 0.0
        %1155 = vmatpush2.msra.mxu0 0.0
        %1156 = vmatprep.subr.mxu0 0.0
        %1157 = vmatpush2.msra.mxu0 0.0
        %1158 = vmatprep.subr.mxu0 0.0
        %1159 = vmatpush2.msra.mxu0 0.0
        %1160 = vmatprep.subr.mxu0 0.0
        %1161 = vmatpush2.msra.mxu0 0.0
        %1162 = vmatprep.subr.mxu0 0.0
        %1163 = vmatpush2.msra.mxu0 0.0
        %1164 = vmatprep.subr.mxu0 0.0
        %1165 = vmatpush2.msra.mxu0 0.0
        %1166 = vmatprep.mubr.f32.mxu0 0.0
        %1167 = vmatmul.mubr.f32.gmra.mxu0 %v846
        %v1168 = vpop.f32.mrf.mxu0
        %v1169 = vadd.f32 0.0, %v1168
        %v1170 = vpop.f32.mrf.mxu0
        %1171 = vmatprep.mubr.f32.mxu0 0.0
        %1172 = vmatmul.mubr.f32.gmra.mxu0 %v848
        %v1173 = vpop.f32.mrf.mxu0
        %v1174 = vadd.f32 0.0, %v1173
        %v1175 = vpop.f32.mrf.mxu0
        %1176 = vmatprep.mubr.f32.mxu0 0.0
        %1177 = vmatmul.mubr.f32.gmra.mxu0 %v850
        %v1178 = vpop.f32.mrf.mxu0
        %v1179 = vadd.f32 0.0, %v1178
        %v1180 = vpop.f32.mrf.mxu0
        %1181 = vmatprep.mubr.f32.mxu0 0.0
        %1182 = vmatmul.mubr.f32.gmra.mxu0 %v852
        %v1183 = vpop.f32.mrf.mxu0
        %v1184 = vadd.f32 0.0, %v1183
        %v1185 = vpop.f32.mrf.mxu0
        %1186 = vmatprep.mubr.f32.mxu0 0.0
        %1187 = vmatmul.mubr.f32.gmra.mxu0 %v854
        %v1188 = vpop.f32.mrf.mxu0
        %v1189 = vadd.f32 0.0, %v1188
        %v1190 = vpop.f32.mrf.mxu0
        %1191 = vmatprep.mubr.f32.mxu0 0.0
        %1192 = vmatmul.mubr.f32.gmra.mxu0 %v856
        %v1193 = vpop.f32.mrf.mxu0
        %v1194 = vadd.f32 0.0, %v1193
        %v1195 = vpop.f32.mrf.mxu0
        %1196 = vmatprep.mubr.f32.mxu0 0.0
        %1197 = vmatmul.mubr.f32.gmra.mxu0 %v858
        %v1198 = vpop.f32.mrf.mxu0
        %v1199 = vadd.f32 0.0, %v1198
        %v1200 = vpop.f32.mrf.mxu0
        %1201 = vmatprep.mubr.f32.mxu0 0.0
        %1202 = vmatmul.mubr.f32.gmra.mxu0 %v860
        %v1203 = vpop.f32.mrf.mxu0
        %v1204 = vadd.f32 0.0, %v1203
        %v1205 = vpop.f32.mrf.mxu0
        %1206 = vmatprep.mubr.f32.mxu0 0.0
        %1207 = vmatmul.mubr.f32.gmra.mxu0 %v862
        %v1208 = vpop.f32.mrf.mxu0
        %v1209 = vadd.f32 0.0, %v1208
        %v1210 = vpop.f32.mrf.mxu0
        %1211 = vmatprep.mubr.f32.mxu0 0.0
        %1212 = vmatmul.mubr.f32.gmra.mxu0 %v864
        %v1213 = vpop.f32.mrf.mxu0
        %v1214 = vadd.f32 0.0, %v1213
        %v1215 = vpop.f32.mrf.mxu0
        %1216 = vmatprep.mubr.f32.mxu0 0.0
        %1217 = vmatmul.mubr.f32.gmra.mxu0 %v866
        %v1218 = vpop.f32.mrf.mxu0
        %v1219 = vadd.f32 0.0, %v1218
        %v1220 = vpop.f32.mrf.mxu0
        %1221 = vmatprep.mubr.f32.mxu0 0.0
        %1222 = vmatmul.mubr.f32.gmra.mxu0 %v868
        %v1223 = vpop.f32.mrf.mxu0
        %v1224 = vadd.f32 0.0, %v1223
        %v1225 = vpop.f32.mrf.mxu0
        %1226 = vmatprep.mubr.f32.mxu0 0.0
        %1227 = vmatmul.mubr.f32.gmra.mxu0 %v870
        %v1228 = vpop.f32.mrf.mxu0
        %v1229 = vadd.f32 0.0, %v1228
        %v1230 = vpop.f32.mrf.mxu0
        %1231 = vmatprep.mubr.f32.mxu0 0.0
        %1232 = vmatmul.mubr.f32.gmra.mxu0 %v872
        %v1233 = vpop.f32.mrf.mxu0
        %v1234 = vadd.f32 0.0, %v1233
        %v1235 = vpop.f32.mrf.mxu0
        %1236 = vmatprep.mubr.f32.mxu0 0.0
        %1237 = vmatmul.mubr.f32.gmra.mxu0 %v874
        %v1238 = vpop.f32.mrf.mxu0
        %v1239 = vadd.f32 0.0, %v1238
        %v1240 = vpop.f32.mrf.mxu0
        %1241 = vmatprep.mubr.f32.mxu0 0.0
        %1242 = vmatmul.mubr.f32.gmra.mxu0 %v876
        %v1243 = vpop.f32.mrf.mxu0
        %v1244 = vadd.f32 0.0, %v1243
        %v1245 = vpop.f32.mrf.mxu0
        %1246 = vdwg.mxu0
        %v1247 = vadd.f32 %v1070, %v1169
        %v1248 = vadd.f32 %v1071, %v1174
        %v1249 = vadd.f32 %v1072, %v1179
        %v1250 = vadd.f32 %v1073, %v1184
        %v1251 = vadd.f32 %v1074, %v1189
        %v1252 = vadd.f32 %v1075, %v1194
        %v1253 = vadd.f32 %v1076, %v1199
        %v1254 = vadd.f32 %v1077, %v1204
        %v1255 = vadd.f32 %v1078, %v1209
        %v1256 = vadd.f32 %v1079, %v1214
        %v1257 = vadd.f32 %v1080, %v1219
        %v1258 = vadd.f32 %v1081, %v1224
        %v1259 = vadd.f32 %v1082, %v1229
        %v1260 = vadd.f32 %v1083, %v1234
        %v1261 = vadd.f32 %v1084, %v1239
        %v1262 = vadd.f32 %v1085, %v1244
        %1263 = vst [vmem:[#allocation4] sm:$0xff] %v1247
        %1264 = vst [vmem:[#allocation4 + $0x8] sm:$0xff] %v1248
        %1265 = vst [vmem:[#allocation4 + $0x10] sm:$0xff] %v1249
        %1266 = vst [vmem:[#allocation4 + $0x18] sm:$0xff] %v1250
        %1267 = vst [vmem:[#allocation4 + $0x20] sm:$0xff] %v1251
        %1268 = vst [vmem:[#allocation4 + $0x28] sm:$0xff] %v1252
        %1269 = vst [vmem:[#allocation4 + $0x30] sm:$0xff] %v1253
        %1270 = vst [vmem:[#allocation4 + $0x38] sm:$0xff] %v1254
        %1271 = vst [vmem:[#allocation4 + $0x40] sm:$0xff] %v1255
        %1272 = vst [vmem:[#allocation4 + $0x48] sm:$0xff] %v1256
        %1273 = vst [vmem:[#allocation4 + $0x50] sm:$0xff] %v1257
        %1274 = vst [vmem:[#allocation4 + $0x58] sm:$0xff] %v1258
        %1275 = vst [vmem:[#allocation4 + $0x60] sm:$0xff] %v1259
        %1276 = vst [vmem:[#allocation4 + $0x68] sm:$0xff] %v1260
        %1277 = vst [vmem:[#allocation4 + $0x70] sm:$0xff] %v1261
        %1278 = vst [vmem:[#allocation4 + $0x78] sm:$0xff] %v1262
        %1279 = vst.msk [vmem:[#allocation2] sm:$0xff] %vm957, %v685
        %1280 = vst.msk [vmem:[#allocation2 + $0x8] sm:$0xff] %vm957, %v686
        %1281 = vst.msk [vmem:[#allocation2 + $0x10] sm:$0xff] %vm957, %v687
        %1282 = vst.msk [vmem:[#allocation2 + $0x18] sm:$0xff] %vm957, %v688
        %1283 = vst.msk [vmem:[#allocation2 + $0x20] sm:$0xff] %vm957, %v689
        %1284 = vst.msk [vmem:[#allocation2 + $0x28] sm:$0xff] %vm957, %v690
        %1285 = vst.msk [vmem:[#allocation2 + $0x30] sm:$0xff] %vm957, %v691
        %1286 = vst.msk [vmem:[#allocation2 + $0x38] sm:$0xff] %vm957, %v692
        %1287 = vst.msk [vmem:[#allocation2 + $0x40] sm:$0xff] %vm957, %v693
        %1288 = vst.msk [vmem:[#allocation2 + $0x48] sm:$0xff] %vm957, %v694
        %1289 = vst.msk [vmem:[#allocation2 + $0x50] sm:$0xff] %vm957, %v695
        %1290 = vst.msk [vmem:[#allocation2 + $0x58] sm:$0xff] %vm957, %v696
        %1291 = vst.msk [vmem:[#allocation2 + $0x60] sm:$0xff] %vm957, %v697
        %1292 = vst.msk [vmem:[#allocation2 + $0x68] sm:$0xff] %vm957, %v698
        %1293 = vst.msk [vmem:[#allocation2 + $0x70] sm:$0xff] %vm957, %v699
        %1294 = vst.msk [vmem:[#allocation2 + $0x78] sm:$0xff] %vm957, %v700
        %p1295 = scmp.eq.s32.totalorder %s34, 1
        // Predicated region
        $region57: #{tpu_custom_call.1} parent=35 // pred_check
          %p1296 = pneg %p1295
        $region58: #{tpu_custom_call.1} parent=35 // pred_check_branch
          %1298 = sbr.rel (%p1296) target = $region60
        $region59: #{tpu_custom_call.1} parent=35 // pred_region
          %v1299 = vld [vmem:[#allocation3] sm:$0xff]
          %v1300 = vld [vmem:[#allocation3 + $0x8] sm:$0xff]
          %v1301 = vld [vmem:[#allocation3 + $0x10] sm:$0xff]
          %v1302 = vld [vmem:[#allocation3 + $0x18] sm:$0xff]
          %v1303 = vld [vmem:[#allocation3 + $0x20] sm:$0xff]
          %v1304 = vld [vmem:[#allocation3 + $0x28] sm:$0xff]
          %v1305 = vld [vmem:[#allocation3 + $0x30] sm:$0xff]
          %v1306 = vld [vmem:[#allocation3 + $0x38] sm:$0xff]
          %v1307 = vld [vmem:[#allocation3 + $0x40] sm:$0xff]
          %v1308 = vld [vmem:[#allocation3 + $0x48] sm:$0xff]
          %v1309 = vld [vmem:[#allocation3 + $0x50] sm:$0xff]
          %v1310 = vld [vmem:[#allocation3 + $0x58] sm:$0xff]
          %v1311 = vld [vmem:[#allocation3 + $0x60] sm:$0xff]
          %v1312 = vld [vmem:[#allocation3 + $0x68] sm:$0xff]
          %v1313 = vld [vmem:[#allocation3 + $0x70] sm:$0xff]
          %v1314 = vld [vmem:[#allocation3 + $0x78] sm:$0xff]
          %v1315 = vrcp.pop %v1299
          %v1316 = vrcp.pop %v1300
          %v1317 = vrcp.pop %v1301
          %v1318 = vrcp.pop %v1302
          %v1319 = vrcp.pop %v1303
          %v1320 = vrcp.pop %v1304
          %v1321 = vrcp.pop %v1305
          %v1322 = vrcp.pop %v1306
          %v1323 = vrcp.pop %v1307
          %v1324 = vrcp.pop %v1308
          %v1325 = vrcp.pop %v1309
          %v1326 = vrcp.pop %v1310
          %v1327 = vrcp.pop %v1311
          %v1328 = vrcp.pop %v1312
          %v1329 = vrcp.pop %v1313
          %v1330 = vrcp.pop %v1314
          %v1331 = vmul.f32 %v1299, %v1315
          %v1332 = vmul.f32 %v1300, %v1316
          %v1333 = vmul.f32 %v1301, %v1317
          %v1334 = vmul.f32 %v1302, %v1318
          %v1335 = vmul.f32 %v1303, %v1319
          %v1336 = vmul.f32 %v1304, %v1320
          %v1337 = vmul.f32 %v1305, %v1321
          %v1338 = vmul.f32 %v1306, %v1322
          %v1339 = vmul.f32 %v1307, %v1323
          %v1340 = vmul.f32 %v1308, %v1324
          %v1341 = vmul.f32 %v1309, %v1325
          %v1342 = vmul.f32 %v1310, %v1326
          %v1343 = vmul.f32 %v1311, %v1327
          %v1344 = vmul.f32 %v1312, %v1328
          %v1345 = vmul.f32 %v1313, %v1329
          %v1346 = vmul.f32 %v1314, %v1330
          %v1347 = vsub.f32 2.0, %v1331
          %v1348 = vsub.f32 2.0, %v1332
          %v1349 = vsub.f32 2.0, %v1333
          %v1350 = vsub.f32 2.0, %v1334
          %v1351 = vsub.f32 2.0, %v1335
          %v1352 = vsub.f32 2.0, %v1336
          %v1353 = vsub.f32 2.0, %v1337
          %v1354 = vsub.f32 2.0, %v1338
          %v1355 = vsub.f32 2.0, %v1339
          %v1356 = vsub.f32 2.0, %v1340
          %v1357 = vsub.f32 2.0, %v1341
          %v1358 = vsub.f32 2.0, %v1342
          %v1359 = vsub.f32 2.0, %v1343
          %v1360 = vsub.f32 2.0, %v1344
          %v1361 = vsub.f32 2.0, %v1345
          %v1362 = vsub.f32 2.0, %v1346
          %v1363 = vmul.f32 %v1315, %v1347
          %v1364 = vmul.f32 %v1316, %v1348
          %v1365 = vmul.f32 %v1317, %v1349
          %v1366 = vmul.f32 %v1318, %v1350
          %v1367 = vmul.f32 %v1319, %v1351
          %v1368 = vmul.f32 %v1320, %v1352
          %v1369 = vmul.f32 %v1321, %v1353
          %v1370 = vmul.f32 %v1322, %v1354
          %v1371 = vmul.f32 %v1323, %v1355
          %v1372 = vmul.f32 %v1324, %v1356
          %v1373 = vmul.f32 %v1325, %v1357
          %v1374 = vmul.f32 %v1326, %v1358
          %v1375 = vmul.f32 %v1327, %v1359
          %v1376 = vmul.f32 %v1328, %v1360
          %v1377 = vmul.f32 %v1329, %v1361
          %v1378 = vmul.f32 %v1330, %v1362
          %v1379 = vld [vmem:[#allocation4] sm:$0xff]
          %v1380 = vld [vmem:[#allocation4 + $0x8] sm:$0xff]
          %v1381 = vld [vmem:[#allocation4 + $0x10] sm:$0xff]
          %v1382 = vld [vmem:[#allocation4 + $0x18] sm:$0xff]
          %v1383 = vld [vmem:[#allocation4 + $0x20] sm:$0xff]
          %v1384 = vld [vmem:[#allocation4 + $0x28] sm:$0xff]
          %v1385 = vld [vmem:[#allocation4 + $0x30] sm:$0xff]
          %v1386 = vld [vmem:[#allocation4 + $0x38] sm:$0xff]
          %v1387 = vld [vmem:[#allocation4 + $0x40] sm:$0xff]
          %v1388 = vld [vmem:[#allocation4 + $0x48] sm:$0xff]
          %v1389 = vld [vmem:[#allocation4 + $0x50] sm:$0xff]
          %v1390 = vld [vmem:[#allocation4 + $0x58] sm:$0xff]
          %v1391 = vld [vmem:[#allocation4 + $0x60] sm:$0xff]
          %v1392 = vld [vmem:[#allocation4 + $0x68] sm:$0xff]
          %v1393 = vld [vmem:[#allocation4 + $0x70] sm:$0xff]
          %v1394 = vld [vmem:[#allocation4 + $0x78] sm:$0xff]
          %1396 = vset.pattern.permute.xlu0 0
          %1397 = vperm.xlu0 %1396, %v1363
          %v1398 = vpop.permute.xlu0 %1397
          %1401 = vset.pattern.permute.xlu0 0
          %1402 = vperm.xlu0 %1401, %v1364
          %v1403 = vpop.permute.xlu0 %1402
          %1406 = vset.pattern.permute.xlu0 0
          %1407 = vperm.xlu0 %1406, %v1365
          %v1408 = vpop.permute.xlu0 %1407
          %1411 = vset.pattern.permute.xlu0 0
          %1412 = vperm.xlu0 %1411, %v1366
          %v1413 = vpop.permute.xlu0 %1412
          %1416 = vset.pattern.permute.xlu0 0
          %1417 = vperm.xlu0 %1416, %v1367
          %v1418 = vpop.permute.xlu0 %1417
          %1421 = vset.pattern.permute.xlu0 0
          %1422 = vperm.xlu0 %1421, %v1368
          %v1423 = vpop.permute.xlu0 %1422
          %1426 = vset.pattern.permute.xlu0 0
          %1427 = vperm.xlu0 %1426, %v1369
          %v1428 = vpop.permute.xlu0 %1427
          %1431 = vset.pattern.permute.xlu0 0
          %1432 = vperm.xlu0 %1431, %v1370
          %v1433 = vpop.permute.xlu0 %1432
          %1436 = vset.pattern.permute.xlu0 0
          %1437 = vperm.xlu0 %1436, %v1371
          %v1438 = vpop.permute.xlu0 %1437
          %1441 = vset.pattern.permute.xlu0 0
          %1442 = vperm.xlu0 %1441, %v1372
          %v1443 = vpop.permute.xlu0 %1442
          %1446 = vset.pattern.permute.xlu0 0
          %1447 = vperm.xlu0 %1446, %v1373
          %v1448 = vpop.permute.xlu0 %1447
          %1451 = vset.pattern.permute.xlu0 0
          %1452 = vperm.xlu0 %1451, %v1374
          %v1453 = vpop.permute.xlu0 %1452
          %1456 = vset.pattern.permute.xlu0 0
          %1457 = vperm.xlu0 %1456, %v1375
          %v1458 = vpop.permute.xlu0 %1457
          %1461 = vset.pattern.permute.xlu0 0
          %1462 = vperm.xlu0 %1461, %v1376
          %v1463 = vpop.permute.xlu0 %1462
          %1466 = vset.pattern.permute.xlu0 0
          %1467 = vperm.xlu0 %1466, %v1377
          %v1468 = vpop.permute.xlu0 %1467
          %1471 = vset.pattern.permute.xlu0 0
          %1472 = vperm.xlu0 %1471, %v1378
          %v1473 = vpop.permute.xlu0 %1472
          %v1475 = vmul.f32 %v1379, %v1398
          %v1476 = vmul.f32 %v1380, %v1403
          %v1477 = vmul.f32 %v1381, %v1408
          %v1478 = vmul.f32 %v1382, %v1413
          %v1479 = vmul.f32 %v1383, %v1418
          %v1480 = vmul.f32 %v1384, %v1423
          %v1481 = vmul.f32 %v1385, %v1428
          %v1482 = vmul.f32 %v1386, %v1433
          %v1483 = vmul.f32 %v1387, %v1438
          %v1484 = vmul.f32 %v1388, %v1443
          %v1485 = vmul.f32 %v1389, %v1448
          %v1486 = vmul.f32 %v1390, %v1453
          %v1487 = vmul.f32 %v1391, %v1458
          %v1488 = vmul.f32 %v1392, %v1463
          %v1489 = vmul.f32 %v1393, %v1468
          %v1490 = vmul.f32 %v1394, %v1473
          %1491 = vst [vmem:[%s369] sm:$0xff] %v1475
          %1492 = vst [vmem:[%s369 + $0x8] sm:$0xff] %v1476
          %1493 = vst [vmem:[%s369 + $0x10] sm:$0xff] %v1477
          %1494 = vst [vmem:[%s369 + $0x18] sm:$0xff] %v1478
          %1495 = vst [vmem:[%s369 + $0x20] sm:$0xff] %v1479
          %1496 = vst [vmem:[%s369 + $0x28] sm:$0xff] %v1480
          %1497 = vst [vmem:[%s369 + $0x30] sm:$0xff] %v1481
          %1498 = vst [vmem:[%s369 + $0x38] sm:$0xff] %v1482
          %1499 = vst [vmem:[%s369 + $0x40] sm:$0xff] %v1483
          %1500 = vst [vmem:[%s369 + $0x48] sm:$0xff] %v1484
          %1501 = vst [vmem:[%s369 + $0x50] sm:$0xff] %v1485
          %1502 = vst [vmem:[%s369 + $0x58] sm:$0xff] %v1486
          %1503 = vst [vmem:[%s369 + $0x60] sm:$0xff] %v1487
          %1504 = vst [vmem:[%s369 + $0x68] sm:$0xff] %v1488
          %1505 = vst [vmem:[%s369 + $0x70] sm:$0xff] %v1489
          %1506 = vst [vmem:[%s369 + $0x78] sm:$0xff] %v1490
        $region60: #{tpu_custom_call.1} parent=35 // pred_fallthru
          _
        %s1507 = sand.u32 %s168, 1
        %s1508 = scalar_lea.sflag [#allocation7], %s1507
        %s1509 = sand.u32 %s168, 1
        %s1510 = smul.addr %s1509, 128
        %s1511 = scalar_lea.vmem [#allocation13], %s1510
        // Predicated region
        $region61: #{tpu_custom_call.1} parent=35 // pred_check
          %p1512 = pneg %p178
        $region62: #{tpu_custom_call.1} parent=35 // pred_check_branch
          %1514 = sbr.rel (%p1512) target = $region64
        $region63: #{tpu_custom_call.1} parent=35 // pred_region
          %s1515 = smul.u32 16, %s33
          %s1517 = ssub.s32 2048, 2048
          %1518 = vsyncadd %s1508, %s1517
          %s1519 = smul.addr %s32, 32
          %s1520 = sadd.s32 %s1515, %s1519
          %s1521 = smul.addr %s1520, 128
          %s1522 = scalar_lea.hbm %s4, %s1521
          %s1523 = sshll.u32 %s1511, 4
          %s1524 = int_to_ptr.vmem [resolvable:$true] %s1523
          %1529 = dma.vmem_to_hbm [thread:$0]  %s1524, 2048, %s1522, %s1508, 128, 128, 8
        $region64: #{tpu_custom_call.1} parent=35 // pred_fallthru
          _
      $region36: #{tpu_custom_call.1} parent=5 // pred_fallthru
        _
      %p1530 = scmp.le.s32.totalorder 2, %s22
      // Predicated region
      $region65: #{tpu_custom_call.1} parent=5 // pred_check
        %p1531 = pneg %p1530
      $region66: #{tpu_custom_call.1} parent=5 // pred_check_branch
        %1533 = sbr.rel (%p1531) target = $region68
      $region67: #{tpu_custom_call.1} parent=5 // pred_region
        %s1534 = ssub.s32 %s22, 2
        // Predicated region
        $region69: #{tpu_custom_call.1} parent=67 // pred_check
          %p1535 = pneg %p184
        $region70: #{tpu_custom_call.1} parent=67 // pred_check_branch
          %1537 = sbr.rel (%p1535) target = $region72
        $region71: #{tpu_custom_call.1} parent=67 // pred_region
          %s1538 = sand.u32 %s169, 1
          %s1539 = scalar_lea.sflag [#allocation7], %s1538
          %s1540 = sand.u32 %s169, 1
          %s1541 = smul.addr %s1540, 128
          %s1542 = scalar_lea.vmem [#allocation13], %s1541
          %1543 = dma.done %s1539, 2048
        $region72: #{tpu_custom_call.1} parent=67 // pred_fallthru
          _
      $region68: #{tpu_custom_call.1} parent=5 // pred_fallthru
        _
    $region6: #{tpu_custom_call.1} parent=1 // loop_footer
      %s26 = sadd.s32 1, %s22
    $region7: #{tpu_custom_call.1} parent=1 // loop_footer_branch
      %21 = sbr.rel target = $region3
    $region8: #{tpu_custom_call.1} parent=1 // loop_exit
      _
    %1544 = vsyncpa [#allocation6], 1
    %s1545 = scalar_lea.sflag [#allocation6], 1
    %1546 = vsyncpa %s1545, 1
    %1547 = vsyncpa [#allocation9], 1
    %s1548 = scalar_lea.sflag [#allocation9], 1
    %1549 = vsyncpa %s1548, 1
    %1550 = vsyncpa [#allocation12], 1
    %s1551 = scalar_lea.sflag [#allocation12], 1
    %1552 = vsyncpa %s1551, 1
    %1553 = vsyncpa [#allocation7], 1
    %s1554 = scalar_lea.sflag [#allocation7], 1
    %1555 = vsyncpa %s1554, 1

</llo_original>
